<compile_context>
chip_gen: v7x
topology: tpu7x:2x2x1
jax: 0.10.0
libtpu: 0.0.40
codegen_flags: <defaults>
</compile_context>

<pallas_src>
import jax
import jax.numpy as jnp
from jax.experimental import pallas as pl
from jax.experimental.pallas import tpu as pltpu

N_EMBED = 64
BLOCK_SIZE = 32
N_HEAD = 4
HEAD_SIZE = N_EMBED // N_HEAD
LN_EPS = 1e-5
NEG_INF = -1e30  # large finite negative (avoids -inf - -inf = NaN pitfalls)


def _layernorm(x, gamma, beta):
    mu = jnp.mean(x, axis=-1, keepdims=True)
    var = jnp.mean((x - mu) ** 2, axis=-1, keepdims=True)
    return (x - mu) * jax.lax.rsqrt(var + LN_EPS) * gamma + beta


def block_kernel(x_ref,
                 g1_ref, be1_ref,
                 wqkv_ref, wo_ref, bo_ref,
                 g2_ref, be2_ref,
                 w1_ref, b1_ref, w2_ref, b2_ref,
                 o_ref):
    nb, T, C = x_ref.shape
    rows = nb * T

    x = x_ref[...]                                   # (nb, T, C) f32 residual
    x2d = x.reshape(rows, C)

    # ---- ln1 + fused QKV projection (softmax scale pre-folded into wq) ----
    xn = _layernorm(x2d, g1_ref[...], be1_ref[...])   # (rows, C) f32
    qkv = jnp.dot(xn.astype(jnp.bfloat16), wqkv_ref[...],
                  preferred_element_type=jnp.float32)  # (rows, 3C), lane-dense
    qkv_bf = qkv.astype(jnp.bfloat16).reshape(nb, T, 3 * C)  # one cast, reused
    q = qkv_bf[:, :, 0 * C:1 * C]
    k = qkv_bf[:, :, 1 * C:2 * C]
    v = qkv_bf[:, :, 2 * C:3 * C]

    # Plain (T, T) causal mask — attention is per packed batch element.
    r_idx = jax.lax.broadcasted_iota(jnp.int32, (T, T), 0)
    c_idx = jax.lax.broadcasted_iota(jnp.int32, (T, T), 1)
    causal = r_idx >= c_idx

    # ---- multi-head causal self-attention (batched over nb) ----
    pv_heads = []
    for h in range(N_HEAD):                           # static 4-way unroll
        lo = h * HEAD_SIZE
        hi = lo + HEAD_SIZE
        qh = q[:, :, lo:hi]                           # (nb, T, hs) bf16
        kh = k[:, :, lo:hi]
        vh = v[:, :, lo:hi]

        wei = jnp.einsum('bqd,bkd->bqk', qh, kh,
                         preferred_element_type=jnp.float32)   # (nb, T, T)
        wei = jnp.where(causal, wei, NEG_INF)

        m = jnp.max(wei, axis=-1, keepdims=True)
        e = jnp.exp(wei - m)                          # unnormalized probs
        denom = jnp.sum(e, axis=-1, keepdims=True)    # (nb, T, 1)

        pv = jnp.einsum('bqk,bkd->bqd', e.astype(jnp.bfloat16), vh,
                        preferred_element_type=jnp.float32)    # (nb, T, hs)
        # normalize AFTER the PV matmul on the small slab (EUP reciprocal)
        pv_heads.append(pv * pl.reciprocal(denom, approx=True))

    attn = jnp.concatenate(pv_heads, axis=-1).reshape(rows, C)   # (rows, C)
    attn_out = jnp.dot(attn.astype(jnp.bfloat16), wo_ref[...],
                       preferred_element_type=jnp.float32) + bo_ref[...]
    x1 = x2d + attn_out

    # ---- ln2 + feed-forward (Linear -> ReLU -> Linear) ----
    xn2 = _layernorm(x1, g2_ref[...], be2_ref[...])
    hid = jnp.dot(xn2.astype(jnp.bfloat16), w1_ref[...],
                  preferred_element_type=jnp.float32) + b1_ref[...]  # (rows, 4C)
    hid = jnp.maximum(hid, 0.0)
    ffn = jnp.dot(hid.astype(jnp.bfloat16), w2_ref[...],
                  preferred_element_type=jnp.float32) + b2_ref[...]

    o_ref[...] = (x1 + ffn).reshape(nb, T, C).astype(o_ref.dtype)


def _num_tensorcores():
    """2 TensorCores/chip on v7x, 1 on v5e/v6e (best-effort detection)."""
    try:
        kind = jax.devices()[0].device_kind.lower()
    except Exception:
        return 1
    return 2 if ("v7" in kind or "7x" in kind) else 1


def _pick_nb(B, T, num_tc, target_rows=512):
    """Batch elements packed per grid step.

    Single-TC (v5e/v6e): just fill ~target_rows rows per step.
    v7x: prefer an even, >=2-step grid, but only if each step keeps >=256 rows.
    """
    divisors = [d for d in range(1, B + 1) if B % d == 0]
    cap = max(1, min(B, target_rows // max(1, T)))
    fits = [d for d in divisors if d <= cap]
    nb = max(fits) if fits else 1
    if num_tc >= 2:
        good = [d for d in fits if (B // d) >= 2 and d * T >= 256]
        even_good = [d for d in good if (B // d) % 2 == 0]
        if even_good:
            nb = max(even_good)
        elif good:
            nb = max(good)
    return nb


def _const_spec(shape):
    nd = len(shape)
    return pl.BlockSpec(shape, lambda b: (0,) * nd)


def pack_params(params):
    """One-time weight prep: fuse q/k/v, fold softmax scale into wq, cast
    matmul weights to bf16.  Call once, not per forward."""
    scale = float(N_EMBED) ** -0.5  # reference: C ** (-0.5), C = n_embed
    wqkv = jnp.concatenate(
        [params["wq"] * scale, params["wk"], params["wv"]],
        axis=1).astype(jnp.bfloat16)                      # (C, 3C)
    return {
        "g1": params["g1"], "be1": params["be1"],
        "wqkv": wqkv,
        "wo": params["wo"].astype(jnp.bfloat16), "bo": params["bo"],
        "g2": params["g2"], "be2": params["be2"],
        "w1": params["w1"].astype(jnp.bfloat16), "b1": params["b1"],
        "w2": params["w2"].astype(jnp.bfloat16), "b2": params["b2"],
    }


def transformer_block(x, packed, nb=None):
    B, T, C = x.shape
    assert C == N_EMBED and T <= BLOCK_SIZE
    if nb is None:
        nb = _pick_nb(B, T, _num_tensorcores())
    assert B % nb == 0
    n_steps = B // nb

    param_list = [
        packed["g1"], packed["be1"],
        packed["wqkv"], packed["wo"], packed["bo"],
        packed["g2"], packed["be2"],
        packed["w1"], packed["b1"], packed["w2"], packed["b2"],
    ]

    in_specs = [pl.BlockSpec((nb, T, C), lambda b: (b, 0, 0))]
    in_specs += [_const_spec(p.shape) for p in param_list]  # resident, no re-DMA

    return pl.pallas_call(
        block_kernel,
        out_shape=jax.ShapeDtypeStruct((B, T, C), x.dtype),
        grid_spec=pltpu.PrefetchScalarGridSpec(
            num_scalar_prefetch=0,
            grid=(n_steps,),
            in_specs=in_specs,
            out_specs=pl.BlockSpec((nb, T, C), lambda b: (b, 0, 0)),
        ),
        compiler_params=pltpu.CompilerParams(
            dimension_semantics=("parallel",)),
    )(x, *param_list)


def init_params(key):
    ks = jax.random.split(key, 10)
    s = 0.02
    return {
        # LayerNorms (PyTorch default: gamma=1, beta=0) — kept as (1, C) rows.
        "g1": jnp.ones((1, N_EMBED), jnp.float32),
        "be1": jnp.zeros((1, N_EMBED), jnp.float32),
        "g2": jnp.ones((1, N_EMBED), jnp.float32),
        "be2": jnp.zeros((1, N_EMBED), jnp.float32),
        # Per-head q/k/v projections concatenated along output dim -> (C, C).
        "wq": s * jax.random.normal(ks[0], (N_EMBED, N_EMBED), jnp.float32),
        "wk": s * jax.random.normal(ks[1], (N_EMBED, N_EMBED), jnp.float32),
        "wv": s * jax.random.normal(ks[2], (N_EMBED, N_EMBED), jnp.float32),
        # Output projection.
        "wo": s * jax.random.normal(ks[3], (N_EMBED, N_EMBED), jnp.float32),
        "bo": s * jax.random.normal(ks[4], (1, N_EMBED), jnp.float32),
        # Feed-forward.
        "w1": s * jax.random.normal(ks[5], (N_EMBED, 4 * N_EMBED), jnp.float32),
        "b1": s * jax.random.normal(ks[6], (1, 4 * N_EMBED), jnp.float32),
        "w2": s * jax.random.normal(ks[7], (4 * N_EMBED, N_EMBED), jnp.float32),
        "b2": s * jax.random.normal(ks[8], (1, N_EMBED), jnp.float32),
    }


def reference_block(x, p):
    """Pure-JAX f32 reference mirroring the PyTorch forward, for verification."""
    def ln(v, g, b):
        mu = jnp.mean(v, axis=-1, keepdims=True)
        var = jnp.mean((v - mu) ** 2, axis=-1, keepdims=True)
        return (v - mu) / jnp.sqrt(var + LN_EPS) * g + b

    B, T, C = x.shape
    xn = ln(x, p["g1"][0], p["be1"][0])
    q = xn @ p["wq"]
    k = xn @ p["wk"]
    v = xn @ p["wv"]
    mask = jnp.tril(jnp.ones((T, T), bool))
    outs = []
    for h in range(N_HEAD):
        lo, hi = h * HEAD_SIZE, (h + 1) * HEAD_SIZE
        wei = jnp.einsum("btd,bsd->bts", q[..., lo:hi], k[..., lo:hi]) * (C ** -0.5)
        wei = jnp.where(mask, wei, -jnp.inf)
        wei = jax.nn.softmax(wei, axis=-1)
        outs.append(jnp.einsum("bts,bsd->btd", wei, v[..., lo:hi]))
    attn = jnp.concatenate(outs, axis=-1) @ p["wo"] + p["bo"][0]
    x1 = x + attn
    xn2 = ln(x1, p["g2"][0], p["be2"][0])
    hid = jax.nn.relu(xn2 @ p["w1"] + p["b1"][0])
    ffn = hid @ p["w2"] + p["b2"][0]
    return x1 + ffn


if __name__ == "__main__":
    key = jax.random.PRNGKey(0)
    k_x, k_p = jax.random.split(key)

    B, T = 2, BLOCK_SIZE  # (2, 32, 64)
    x = jax.random.normal(k_x, (B, T, N_EMBED), jnp.float32)
    params = init_params(k_p)
    packed = pack_params(params)  # one-time weight prep (concat / scale / bf16)

    out = transformer_block(x, packed)
    out = jax.block_until_ready(out)

    ref = reference_block(x, params)
    assert out.shape == (B, T, N_EMBED)
    # bf16 matmul operands + approx reciprocal -> slightly looser tolerance.
    assert jnp.allclose(out, ref, atol=5e-3, rtol=5e-3), \
        float(jnp.max(jnp.abs(out - ref)))

    print("KERNEL_OK")
</pallas_src>

<mosaic_0001>
module attributes {stable_mosaic.version = 11 : i64} {
  func.func @block_kernel(%arg0: i32, %arg1: memref<2x32x64xf32, #tpu.memory_space<vmem>>, %arg2: memref<1x64xf32, #tpu.memory_space<vmem>>, %arg3: memref<1x64xf32, #tpu.memory_space<vmem>>, %arg4: memref<64x192xbf16, #tpu.memory_space<vmem>>, %arg5: memref<64x64xbf16, #tpu.memory_space<vmem>>, %arg6: memref<1x64xf32, #tpu.memory_space<vmem>>, %arg7: memref<1x64xf32, #tpu.memory_space<vmem>>, %arg8: memref<1x64xf32, #tpu.memory_space<vmem>>, %arg9: memref<64x256xbf16, #tpu.memory_space<vmem>>, %arg10: memref<1x256xf32, #tpu.memory_space<vmem>>, %arg11: memref<256x64xbf16, #tpu.memory_space<vmem>>, %arg12: memref<1x64xf32, #tpu.memory_space<vmem>>, %arg13: memref<2x32x64xf32, #tpu.memory_space<vmem>>) attributes {dimension_semantics = [#tpu.dimension_semantics<parallel>], iteration_bounds = array<i64: 1>, scalar_prefetch = 0 : i64, scratch_operands = 0 : i64, tpu.core_type = #tpu.core_type<tc>, window_params = [{transform_indices = @transform_0, window_bounds = array<i64: 2, 32, 64>}, {pipeline_mode = #tpu.pipeline_mode<synchronous>, transform_indices = @transform_1, window_bounds = array<i64: 1, 64>}, {pipeline_mode = #tpu.pipeline_mode<synchronous>, transform_indices = @transform_2, window_bounds = array<i64: 1, 64>}, {pipeline_mode = #tpu.pipeline_mode<synchronous>, transform_indices = @transform_3, window_bounds = array<i64: 64, 192>}, {pipeline_mode = #tpu.pipeline_mode<synchronous>, transform_indices = @transform_4, window_bounds = array<i64: 64, 64>}, {pipeline_mode = #tpu.pipeline_mode<synchronous>, transform_indices = @transform_5, window_bounds = array<i64: 1, 64>}, {pipeline_mode = #tpu.pipeline_mode<synchronous>, transform_indices = @transform_6, window_bounds = array<i64: 1, 64>}, {pipeline_mode = #tpu.pipeline_mode<synchronous>, transform_indices = @transform_7, window_bounds = array<i64: 1, 64>}, {pipeline_mode = #tpu.pipeline_mode<synchronous>, transform_indices = @transform_8, window_bounds = array<i64: 64, 256>}, {pipeline_mode = #tpu.pipeline_mode<synchronous>, transform_indices = @transform_9, window_bounds = array<i64: 1, 256>}, {pipeline_mode = #tpu.pipeline_mode<synchronous>, transform_indices = @transform_10, window_bounds = array<i64: 256, 64>}, {pipeline_mode = #tpu.pipeline_mode<synchronous>, transform_indices = @transform_11, window_bounds = array<i64: 1, 64>}, {transform_indices = @transform_12, window_bounds = array<i64: 2, 32, 64>}]} {
    %c0 = arith.constant 0 : index
    %c0_0 = arith.constant 0 : index
    %c0_1 = arith.constant 0 : index
    %0 = vector.load %arg1[%c0, %c0_0, %c0_1] : memref<2x32x64xf32, #tpu.memory_space<vmem>>, vector<2x32x64xf32>
    %1 = vector.shape_cast %0 : vector<2x32x64xf32> to vector<64x64xf32>
    %c0_2 = arith.constant 0 : index
    %c0_3 = arith.constant 0 : index
    %2 = vector.load %arg2[%c0_2, %c0_3] : memref<1x64xf32, #tpu.memory_space<vmem>>, vector<1x64xf32>
    %c0_4 = arith.constant 0 : index
    %c0_5 = arith.constant 0 : index
    %3 = vector.load %arg3[%c0_4, %c0_5] : memref<1x64xf32, #tpu.memory_space<vmem>>, vector<1x64xf32>
    %cst = arith.constant dense<0.000000e+00> : vector<64xf32>
    %4 = vector.multi_reduction <add>, %1, %cst [1] : vector<64x64xf32> to vector<64xf32>
    %5 = vector.shape_cast %4 : vector<64xf32> to vector<64x1xf32>
    %cst_6 = arith.constant 6.400000e+01 : f32
    %6 = vector.broadcast %cst_6 : f32 to vector<64x1xf32>
    %7 = arith.divf %5, %6 : vector<64x1xf32>
    %8 = vector.broadcast %7 : vector<64x1xf32> to vector<64x64xf32>
    %9 = arith.subf %1, %8 : vector<64x64xf32>
    %10 = arith.mulf %9, %9 : vector<64x64xf32>
    %cst_7 = arith.constant dense<0.000000e+00> : vector<64xf32>
    %11 = vector.multi_reduction <add>, %10, %cst_7 [1] : vector<64x64xf32> to vector<64xf32>
    %12 = vector.shape_cast %11 : vector<64xf32> to vector<64x1xf32>
    %cst_8 = arith.constant 6.400000e+01 : f32
    %13 = vector.broadcast %cst_8 : f32 to vector<64x1xf32>
    %14 = arith.divf %12, %13 : vector<64x1xf32>
    %15 = vector.broadcast %7 : vector<64x1xf32> to vector<64x64xf32>
    %16 = arith.subf %1, %15 : vector<64x64xf32>
    %cst_9 = arith.constant 9.99999974E-6 : f32
    %17 = vector.broadcast %cst_9 : f32 to vector<64x1xf32>
    %18 = arith.addf %14, %17 : vector<64x1xf32>
    %19 = math.rsqrt %18 : vector<64x1xf32>
    %20 = vector.broadcast %19 : vector<64x1xf32> to vector<64x64xf32>
    %21 = arith.mulf %16, %20 : vector<64x64xf32>
    %22 = vector.broadcast %2 : vector<1x64xf32> to vector<64x64xf32>
    %23 = arith.mulf %21, %22 : vector<64x64xf32>
    %24 = vector.broadcast %3 : vector<1x64xf32> to vector<64x64xf32>
    %25 = arith.addf %23, %24 : vector<64x64xf32>
    %26 = arith.truncf %25 : vector<64x64xf32> to vector<64x64xbf16>
    %c0_10 = arith.constant 0 : index
    %c0_11 = arith.constant 0 : index
    %27 = vector.load %arg4[%c0_10, %c0_11] : memref<64x192xbf16, #tpu.memory_space<vmem>>, vector<64x192xbf16>
    %cst_12 = arith.constant dense<0.000000e+00> : vector<64x192xf32>
    %28 = tpu.matmul %26, %27, %cst_12 {dimension_numbers = #tpu.dot_dimension_numbers<[1], [0], [0], [1], [0, 0, 1, 1], [], []>} : vector<64x64xbf16>, vector<64x192xbf16>, vector<64x192xf32> -> vector<64x192xf32>
    %29 = arith.truncf %28 : vector<64x192xf32> to vector<64x192xbf16>
    %30 = vector.shape_cast %29 : vector<64x192xbf16> to vector<2x32x192xbf16>
    %31 = vector.extract_strided_slice %30 {offsets = [0, 0, 0], sizes = [2, 32, 64], strides = [1, 1, 1]} : vector<2x32x192xbf16> to vector<2x32x64xbf16>
    %32 = vector.extract_strided_slice %30 {offsets = [0, 0, 64], sizes = [2, 32, 64], strides = [1, 1, 1]} : vector<2x32x192xbf16> to vector<2x32x64xbf16>
    %33 = vector.extract_strided_slice %30 {offsets = [0, 0, 128], sizes = [2, 32, 64], strides = [1, 1, 1]} : vector<2x32x192xbf16> to vector<2x32x64xbf16>
    %34 = tpu.iota {dimensions = array<i32: 0>} : vector<32x32xi32>
    %35 = tpu.iota {dimensions = array<i32: 1>} : vector<32x32xi32>
    %36 = arith.cmpi sge, %34, %35 : vector<32x32xi32>
    %37 = vector.extract_strided_slice %31 {offsets = [0, 0, 0], sizes = [2, 32, 16], strides = [1, 1, 1]} : vector<2x32x64xbf16> to vector<2x32x16xbf16>
    %38 = vector.extract_strided_slice %32 {offsets = [0, 0, 0], sizes = [2, 32, 16], strides = [1, 1, 1]} : vector<2x32x64xbf16> to vector<2x32x16xbf16>
    %39 = vector.extract_strided_slice %33 {offsets = [0, 0, 0], sizes = [2, 32, 16], strides = [1, 1, 1]} : vector<2x32x64xbf16> to vector<2x32x16xbf16>
    "tpu.trace_start"() <{level = 10 : i32, message = "bqd,bkd->bqk"}> : () -> ()
    %cst_13 = arith.constant dense<0.000000e+00> : vector<2x32x32xf32>
    %40 = tpu.matmul %37, %38, %cst_13 {dimension_numbers = #tpu.dot_dimension_numbers<[2], [2], [1], [1], [0, 0, 0, 1, 1, 1], [0], [0]>} : vector<2x32x16xbf16>, vector<2x32x16xbf16>, vector<2x32x32xf32> -> vector<2x32x32xf32>
    %cst_14 = arith.constant -1.000000e+30 : f32
    "tpu.trace_stop"() : () -> ()
    %41 = vector.shape_cast %36 : vector<32x32xi1> to vector<1x32x32xi1>
    %42 = vector.broadcast %41 : vector<1x32x32xi1> to vector<2x32x32xi1>
    %43 = vector.broadcast %cst_14 : f32 to vector<2x32x32xf32>
    %44 = arith.select %42, %40, %43 : vector<2x32x32xi1>, vector<2x32x32xf32>
    %cst_15 = arith.constant dense<0xFF800000> : vector<2x32xf32>
    %45 = vector.multi_reduction <maximumf>, %44, %cst_15 [2] : vector<2x32x32xf32> to vector<2x32xf32>
    %46 = vector.shape_cast %45 : vector<2x32xf32> to vector<2x32x1xf32>
    %47 = vector.broadcast %46 : vector<2x32x1xf32> to vector<2x32x32xf32>
    %48 = arith.subf %44, %47 : vector<2x32x32xf32>
    %49 = math.exp %48 : vector<2x32x32xf32>
    %cst_16 = arith.constant dense<0.000000e+00> : vector<2x32xf32>
    %50 = vector.multi_reduction <add>, %49, %cst_16 [2] : vector<2x32x32xf32> to vector<2x32xf32>
    %51 = vector.shape_cast %50 : vector<2x32xf32> to vector<2x32x1xf32>
    %52 = arith.truncf %49 : vector<2x32x32xf32> to vector<2x32x32xbf16>
    "tpu.trace_start"() <{level = 10 : i32, message = "bqk,bkd->bqd"}> : () -> ()
    %cst_17 = arith.constant dense<0.000000e+00> : vector<2x32x16xf32>
    %53 = tpu.matmul %52, %39, %cst_17 {dimension_numbers = #tpu.dot_dimension_numbers<[2], [1], [1], [2], [0, 0, 0, 1, 1, 2], [0], [0]>} : vector<2x32x32xbf16>, vector<2x32x16xbf16>, vector<2x32x16xf32> -> vector<2x32x16xf32>
    "tpu.trace_stop"() : () -> ()
    %54 = tpu.reciprocal %51 {approx = true} : vector<2x32x1xf32> -> vector<2x32x1xf32>
    %55 = vector.broadcast %54 : vector<2x32x1xf32> to vector<2x32x16xf32>
    %56 = arith.mulf %53, %55 : vector<2x32x16xf32>
    %57 = vector.extract_strided_slice %31 {offsets = [0, 0, 16], sizes = [2, 32, 16], strides = [1, 1, 1]} : vector<2x32x64xbf16> to vector<2x32x16xbf16>
    %58 = vector.extract_strided_slice %32 {offsets = [0, 0, 16], sizes = [2, 32, 16], strides = [1, 1, 1]} : vector<2x32x64xbf16> to vector<2x32x16xbf16>
    %59 = vector.extract_strided_slice %33 {offsets = [0, 0, 16], sizes = [2, 32, 16], strides = [1, 1, 1]} : vector<2x32x64xbf16> to vector<2x32x16xbf16>
    "tpu.trace_start"() <{level = 10 : i32, message = "bqd,bkd->bqk"}> : () -> ()
    %cst_18 = arith.constant dense<0.000000e+00> : vector<2x32x32xf32>
    %60 = tpu.matmul %57, %58, %cst_18 {dimension_numbers = #tpu.dot_dimension_numbers<[2], [2], [1], [1], [0, 0, 0, 1, 1, 1], [0], [0]>} : vector<2x32x16xbf16>, vector<2x32x16xbf16>, vector<2x32x32xf32> -> vector<2x32x32xf32>
    %cst_19 = arith.constant -1.000000e+30 : f32
    "tpu.trace_stop"() : () -> ()
    %61 = vector.shape_cast %36 : vector<32x32xi1> to vector<1x32x32xi1>
    %62 = vector.broadcast %61 : vector<1x32x32xi1> to vector<2x32x32xi1>
    %63 = vector.broadcast %cst_19 : f32 to vector<2x32x32xf32>
    %64 = arith.select %62, %60, %63 : vector<2x32x32xi1>, vector<2x32x32xf32>
    %cst_20 = arith.constant dense<0xFF800000> : vector<2x32xf32>
    %65 = vector.multi_reduction <maximumf>, %64, %cst_20 [2] : vector<2x32x32xf32> to vector<2x32xf32>
    %66 = vector.shape_cast %65 : vector<2x32xf32> to vector<2x32x1xf32>
    %67 = vector.broadcast %66 : vector<2x32x1xf32> to vector<2x32x32xf32>
    %68 = arith.subf %64, %67 : vector<2x32x32xf32>
    %69 = math.exp %68 : vector<2x32x32xf32>
    %cst_21 = arith.constant dense<0.000000e+00> : vector<2x32xf32>
    %70 = vector.multi_reduction <add>, %69, %cst_21 [2] : vector<2x32x32xf32> to vector<2x32xf32>
    %71 = vector.shape_cast %70 : vector<2x32xf32> to vector<2x32x1xf32>
    %72 = arith.truncf %69 : vector<2x32x32xf32> to vector<2x32x32xbf16>
    "tpu.trace_start"() <{level = 10 : i32, message = "bqk,bkd->bqd"}> : () -> ()
    %cst_22 = arith.constant dense<0.000000e+00> : vector<2x32x16xf32>
    %73 = tpu.matmul %72, %59, %cst_22 {dimension_numbers = #tpu.dot_dimension_numbers<[2], [1], [1], [2], [0, 0, 0, 1, 1, 2], [0], [0]>} : vector<2x32x32xbf16>, vector<2x32x16xbf16>, vector<2x32x16xf32> -> vector<2x32x16xf32>
    "tpu.trace_stop"() : () -> ()
    %74 = tpu.reciprocal %71 {approx = true} : vector<2x32x1xf32> -> vector<2x32x1xf32>
    %75 = vector.broadcast %74 : vector<2x32x1xf32> to vector<2x32x16xf32>
    %76 = arith.mulf %73, %75 : vector<2x32x16xf32>
    %77 = vector.extract_strided_slice %31 {offsets = [0, 0, 32], sizes = [2, 32, 16], strides = [1, 1, 1]} : vector<2x32x64xbf16> to vector<2x32x16xbf16>
    %78 = vector.extract_strided_slice %32 {offsets = [0, 0, 32], sizes = [2, 32, 16], strides = [1, 1, 1]} : vector<2x32x64xbf16> to vector<2x32x16xbf16>
    %79 = vector.extract_strided_slice %33 {offsets = [0, 0, 32], sizes = [2, 32, 16], strides = [1, 1, 1]} : vector<2x32x64xbf16> to vector<2x32x16xbf16>
    "tpu.trace_start"() <{level = 10 : i32, message = "bqd,bkd->bqk"}> : () -> ()
    %cst_23 = arith.constant dense<0.000000e+00> : vector<2x32x32xf32>
    %80 = tpu.matmul %77, %78, %cst_23 {dimension_numbers = #tpu.dot_dimension_numbers<[2], [2], [1], [1], [0, 0, 0, 1, 1, 1], [0], [0]>} : vector<2x32x16xbf16>, vector<2x32x16xbf16>, vector<2x32x32xf32> -> vector<2x32x32xf32>
    %cst_24 = arith.constant -1.000000e+30 : f32
    "tpu.trace_stop"() : () -> ()
    %81 = vector.shape_cast %36 : vector<32x32xi1> to vector<1x32x32xi1>
    %82 = vector.broadcast %81 : vector<1x32x32xi1> to vector<2x32x32xi1>
    %83 = vector.broadcast %cst_24 : f32 to vector<2x32x32xf32>
    %84 = arith.select %82, %80, %83 : vector<2x32x32xi1>, vector<2x32x32xf32>
    %cst_25 = arith.constant dense<0xFF800000> : vector<2x32xf32>
    %85 = vector.multi_reduction <maximumf>, %84, %cst_25 [2] : vector<2x32x32xf32> to vector<2x32xf32>
    %86 = vector.shape_cast %85 : vector<2x32xf32> to vector<2x32x1xf32>
    %87 = vector.broadcast %86 : vector<2x32x1xf32> to vector<2x32x32xf32>
    %88 = arith.subf %84, %87 : vector<2x32x32xf32>
    %89 = math.exp %88 : vector<2x32x32xf32>
    %cst_26 = arith.constant dense<0.000000e+00> : vector<2x32xf32>
    %90 = vector.multi_reduction <add>, %89, %cst_26 [2] : vector<2x32x32xf32> to vector<2x32xf32>
    %91 = vector.shape_cast %90 : vector<2x32xf32> to vector<2x32x1xf32>
    %92 = arith.truncf %89 : vector<2x32x32xf32> to vector<2x32x32xbf16>
    "tpu.trace_start"() <{level = 10 : i32, message = "bqk,bkd->bqd"}> : () -> ()
    %cst_27 = arith.constant dense<0.000000e+00> : vector<2x32x16xf32>
    %93 = tpu.matmul %92, %79, %cst_27 {dimension_numbers = #tpu.dot_dimension_numbers<[2], [1], [1], [2], [0, 0, 0, 1, 1, 2], [0], [0]>} : vector<2x32x32xbf16>, vector<2x32x16xbf16>, vector<2x32x16xf32> -> vector<2x32x16xf32>
    "tpu.trace_stop"() : () -> ()
    %94 = tpu.reciprocal %91 {approx = true} : vector<2x32x1xf32> -> vector<2x32x1xf32>
    %95 = vector.broadcast %94 : vector<2x32x1xf32> to vector<2x32x16xf32>
    %96 = arith.mulf %93, %95 : vector<2x32x16xf32>
    %97 = vector.extract_strided_slice %31 {offsets = [0, 0, 48], sizes = [2, 32, 16], strides = [1, 1, 1]} : vector<2x32x64xbf16> to vector<2x32x16xbf16>
    %98 = vector.extract_strided_slice %32 {offsets = [0, 0, 48], sizes = [2, 32, 16], strides = [1, 1, 1]} : vector<2x32x64xbf16> to vector<2x32x16xbf16>
    %99 = vector.extract_strided_slice %33 {offsets = [0, 0, 48], sizes = [2, 32, 16], strides = [1, 1, 1]} : vector<2x32x64xbf16> to vector<2x32x16xbf16>
    "tpu.trace_start"() <{level = 10 : i32, message = "bqd,bkd->bqk"}> : () -> ()
    %cst_28 = arith.constant dense<0.000000e+00> : vector<2x32x32xf32>
    %100 = tpu.matmul %97, %98, %cst_28 {dimension_numbers = #tpu.dot_dimension_numbers<[2], [2], [1], [1], [0, 0, 0, 1, 1, 1], [0], [0]>} : vector<2x32x16xbf16>, vector<2x32x16xbf16>, vector<2x32x32xf32> -> vector<2x32x32xf32>
    %cst_29 = arith.constant -1.000000e+30 : f32
    "tpu.trace_stop"() : () -> ()
    %101 = vector.shape_cast %36 : vector<32x32xi1> to vector<1x32x32xi1>
    %102 = vector.broadcast %101 : vector<1x32x32xi1> to vector<2x32x32xi1>
    %103 = vector.broadcast %cst_29 : f32 to vector<2x32x32xf32>
    %104 = arith.select %102, %100, %103 : vector<2x32x32xi1>, vector<2x32x32xf32>
    %cst_30 = arith.constant dense<0xFF800000> : vector<2x32xf32>
    %105 = vector.multi_reduction <maximumf>, %104, %cst_30 [2] : vector<2x32x32xf32> to vector<2x32xf32>
    %106 = vector.shape_cast %105 : vector<2x32xf32> to vector<2x32x1xf32>
    %107 = vector.broadcast %106 : vector<2x32x1xf32> to vector<2x32x32xf32>
    %108 = arith.subf %104, %107 : vector<2x32x32xf32>
    %109 = math.exp %108 : vector<2x32x32xf32>
    %cst_31 = arith.constant dense<0.000000e+00> : vector<2x32xf32>
    %110 = vector.multi_reduction <add>, %109, %cst_31 [2] : vector<2x32x32xf32> to vector<2x32xf32>
    %111 = vector.shape_cast %110 : vector<2x32xf32> to vector<2x32x1xf32>
    %112 = arith.truncf %109 : vector<2x32x32xf32> to vector<2x32x32xbf16>
    "tpu.trace_start"() <{level = 10 : i32, message = "bqk,bkd->bqd"}> : () -> ()
    %cst_32 = arith.constant dense<0.000000e+00> : vector<2x32x16xf32>
    %113 = tpu.matmul %112, %99, %cst_32 {dimension_numbers = #tpu.dot_dimension_numbers<[2], [1], [1], [2], [0, 0, 0, 1, 1, 2], [0], [0]>} : vector<2x32x32xbf16>, vector<2x32x16xbf16>, vector<2x32x16xf32> -> vector<2x32x16xf32>
    "tpu.trace_stop"() : () -> ()
    %114 = tpu.reciprocal %111 {approx = true} : vector<2x32x1xf32> -> vector<2x32x1xf32>
    %115 = vector.broadcast %114 : vector<2x32x1xf32> to vector<2x32x16xf32>
    %116 = arith.mulf %113, %115 : vector<2x32x16xf32>
    %117 = tpu.concatenate %56, %76, %96, %116 in 2 : vector<2x32x16xf32>, vector<2x32x16xf32>, vector<2x32x16xf32>, vector<2x32x16xf32> -> vector<2x32x64xf32>
    %118 = vector.shape_cast %117 : vector<2x32x64xf32> to vector<64x64xf32>
    %119 = arith.truncf %118 : vector<64x64xf32> to vector<64x64xbf16>
    %c0_33 = arith.constant 0 : index
    %c0_34 = arith.constant 0 : index
    %120 = vector.load %arg5[%c0_33, %c0_34] : memref<64x64xbf16, #tpu.memory_space<vmem>>, vector<64x64xbf16>
    %cst_35 = arith.constant dense<0.000000e+00> : vector<64x64xf32>
    %121 = tpu.matmul %119, %120, %cst_35 {dimension_numbers = #tpu.dot_dimension_numbers<[1], [0], [0], [1], [0, 0, 1, 1], [], []>} : vector<64x64xbf16>, vector<64x64xbf16>, vector<64x64xf32> -> vector<64x64xf32>
    %c0_36 = arith.constant 0 : index
    %c0_37 = arith.constant 0 : index
    %122 = vector.load %arg6[%c0_36, %c0_37] : memref<1x64xf32, #tpu.memory_space<vmem>>, vector<1x64xf32>
    %123 = vector.broadcast %122 : vector<1x64xf32> to vector<64x64xf32>
    %124 = arith.addf %121, %123 : vector<64x64xf32>
    %125 = arith.addf %1, %124 : vector<64x64xf32>
    %c0_38 = arith.constant 0 : index
    %c0_39 = arith.constant 0 : index
    %126 = vector.load %arg7[%c0_38, %c0_39] : memref<1x64xf32, #tpu.memory_space<vmem>>, vector<1x64xf32>
    %c0_40 = arith.constant 0 : index
    %c0_41 = arith.constant 0 : index
    %127 = vector.load %arg8[%c0_40, %c0_41] : memref<1x64xf32, #tpu.memory_space<vmem>>, vector<1x64xf32>
    %cst_42 = arith.constant dense<0.000000e+00> : vector<64xf32>
    %128 = vector.multi_reduction <add>, %125, %cst_42 [1] : vector<64x64xf32> to vector<64xf32>
    %129 = vector.shape_cast %128 : vector<64xf32> to vector<64x1xf32>
    %cst_43 = arith.constant 6.400000e+01 : f32
    %130 = vector.broadcast %cst_43 : f32 to vector<64x1xf32>
    %131 = arith.divf %129, %130 : vector<64x1xf32>
    %132 = vector.broadcast %131 : vector<64x1xf32> to vector<64x64xf32>
    %133 = arith.subf %125, %132 : vector<64x64xf32>
    %134 = arith.mulf %133, %133 : vector<64x64xf32>
    %cst_44 = arith.constant dense<0.000000e+00> : vector<64xf32>
    %135 = vector.multi_reduction <add>, %134, %cst_44 [1] : vector<64x64xf32> to vector<64xf32>
    %136 = vector.shape_cast %135 : vector<64xf32> to vector<64x1xf32>
    %cst_45 = arith.constant 6.400000e+01 : f32
    %137 = vector.broadcast %cst_45 : f32 to vector<64x1xf32>
    %138 = arith.divf %136, %137 : vector<64x1xf32>
    %139 = vector.broadcast %131 : vector<64x1xf32> to vector<64x64xf32>
    %140 = arith.subf %125, %139 : vector<64x64xf32>
    %cst_46 = arith.constant 9.99999974E-6 : f32
    %141 = vector.broadcast %cst_46 : f32 to vector<64x1xf32>
    %142 = arith.addf %138, %141 : vector<64x1xf32>
    %143 = math.rsqrt %142 : vector<64x1xf32>
    %144 = vector.broadcast %143 : vector<64x1xf32> to vector<64x64xf32>
    %145 = arith.mulf %140, %144 : vector<64x64xf32>
    %146 = vector.broadcast %126 : vector<1x64xf32> to vector<64x64xf32>
    %147 = arith.mulf %145, %146 : vector<64x64xf32>
    %148 = vector.broadcast %127 : vector<1x64xf32> to vector<64x64xf32>
    %149 = arith.addf %147, %148 : vector<64x64xf32>
    %150 = arith.truncf %149 : vector<64x64xf32> to vector<64x64xbf16>
    %c0_47 = arith.constant 0 : index
    %c0_48 = arith.constant 0 : index
    %151 = vector.load %arg9[%c0_47, %c0_48] : memref<64x256xbf16, #tpu.memory_space<vmem>>, vector<64x256xbf16>
    %cst_49 = arith.constant dense<0.000000e+00> : vector<64x256xf32>
    %152 = tpu.matmul %150, %151, %cst_49 {dimension_numbers = #tpu.dot_dimension_numbers<[1], [0], [0], [1], [0, 0, 1, 1], [], []>} : vector<64x64xbf16>, vector<64x256xbf16>, vector<64x256xf32> -> vector<64x256xf32>
    %c0_50 = arith.constant 0 : index
    %c0_51 = arith.constant 0 : index
    %153 = vector.load %arg10[%c0_50, %c0_51] : memref<1x256xf32, #tpu.memory_space<vmem>>, vector<1x256xf32>
    %154 = vector.broadcast %153 : vector<1x256xf32> to vector<64x256xf32>
    %155 = arith.addf %152, %154 : vector<64x256xf32>
    %cst_52 = arith.constant 0.000000e+00 : f32
    %156 = vector.broadcast %cst_52 : f32 to vector<64x256xf32>
    %157 = arith.maximumf %155, %156 : vector<64x256xf32>
    %158 = arith.truncf %157 : vector<64x256xf32> to vector<64x256xbf16>
    %c0_53 = arith.constant 0 : index
    %c0_54 = arith.constant 0 : index
    %159 = vector.load %arg11[%c0_53, %c0_54] : memref<256x64xbf16, #tpu.memory_space<vmem>>, vector<256x64xbf16>
    %cst_55 = arith.constant dense<0.000000e+00> : vector<64x64xf32>
    %160 = tpu.matmul %158, %159, %cst_55 {dimension_numbers = #tpu.dot_dimension_numbers<[1], [0], [0], [1], [0, 0, 1, 1], [], []>} : vector<64x256xbf16>, vector<256x64xbf16>, vector<64x64xf32> -> vector<64x64xf32>
    %c0_56 = arith.constant 0 : index
    %c0_57 = arith.constant 0 : index
    %161 = vector.load %arg12[%c0_56, %c0_57] : memref<1x64xf32, #tpu.memory_space<vmem>>, vector<1x64xf32>
    %162 = vector.broadcast %161 : vector<1x64xf32> to vector<64x64xf32>
    %163 = arith.addf %160, %162 : vector<64x64xf32>
    %164 = arith.addf %125, %163 : vector<64x64xf32>
    %165 = vector.shape_cast %164 : vector<64x64xf32> to vector<2x32x64xf32>
    %c0_58 = arith.constant 0 : index
    %c0_59 = arith.constant 0 : index
    %c0_60 = arith.constant 0 : index
    %166 = vector.load %arg13[%c0_58, %c0_59, %c0_60] : memref<2x32x64xf32, #tpu.memory_space<vmem>>, vector<2x32x64xf32>
    tpu.vector_store %arg13[%c0_58, %c0_59, %c0_60], %165 {strides = array<i32>} : memref<2x32x64xf32, #tpu.memory_space<vmem>>, vector<2x32x64xf32>,
    return
  }
  func.func @transform_0(%arg0: i32) -> (i32, i32, i32) {
    %c0_i32 = arith.constant 0 : i32
    %c0_i32_0 = arith.constant 0 : i32
    %c0_i32_1 = arith.constant 0 : i32
    return %arg0, %c0_i32, %c0_i32_0 : i32, i32, i32
  }
  func.func @transform_1(%arg0: i32) -> (i32, i32) {
    %c0_i32 = arith.constant 0 : i32
    %c0_i32_0 = arith.constant 0 : i32
    %c0_i32_1 = arith.constant 0 : i32
    return %c0_i32, %c0_i32_0 : i32, i32
  }
  func.func @transform_2(%arg0: i32) -> (i32, i32) {
    %c0_i32 = arith.constant 0 : i32
    %c0_i32_0 = arith.constant 0 : i32
    %c0_i32_1 = arith.constant 0 : i32
    return %c0_i32, %c0_i32_0 : i32, i32
  }
  func.func @transform_3(%arg0: i32) -> (i32, i32) {
    %c0_i32 = arith.constant 0 : i32
    %c0_i32_0 = arith.constant 0 : i32
    %c0_i32_1 = arith.constant 0 : i32
    return %c0_i32, %c0_i32_0 : i32, i32
  }
  func.func @transform_4(%arg0: i32) -> (i32, i32) {
    %c0_i32 = arith.constant 0 : i32
    %c0_i32_0 = arith.constant 0 : i32
    %c0_i32_1 = arith.constant 0 : i32
    return %c0_i32, %c0_i32_0 : i32, i32
  }
  func.func @transform_5(%arg0: i32) -> (i32, i32) {
    %c0_i32 = arith.constant 0 : i32
    %c0_i32_0 = arith.constant 0 : i32
    %c0_i32_1 = arith.constant 0 : i32
    return %c0_i32, %c0_i32_0 : i32, i32
  }
  func.func @transform_6(%arg0: i32) -> (i32, i32) {
    %c0_i32 = arith.constant 0 : i32
    %c0_i32_0 = arith.constant 0 : i32
    %c0_i32_1 = arith.constant 0 : i32
    return %c0_i32, %c0_i32_0 : i32, i32
  }
  func.func @transform_7(%arg0: i32) -> (i32, i32) {
    %c0_i32 = arith.constant 0 : i32
    %c0_i32_0 = arith.constant 0 : i32
    %c0_i32_1 = arith.constant 0 : i32
    return %c0_i32, %c0_i32_0 : i32, i32
  }
  func.func @transform_8(%arg0: i32) -> (i32, i32) {
    %c0_i32 = arith.constant 0 : i32
    %c0_i32_0 = arith.constant 0 : i32
    %c0_i32_1 = arith.constant 0 : i32
    return %c0_i32, %c0_i32_0 : i32, i32
  }
  func.func @transform_9(%arg0: i32) -> (i32, i32) {
    %c0_i32 = arith.constant 0 : i32
    %c0_i32_0 = arith.constant 0 : i32
    %c0_i32_1 = arith.constant 0 : i32
    return %c0_i32, %c0_i32_0 : i32, i32
  }
  func.func @transform_10(%arg0: i32) -> (i32, i32) {
    %c0_i32 = arith.constant 0 : i32
    %c0_i32_0 = arith.constant 0 : i32
    %c0_i32_1 = arith.constant 0 : i32
    return %c0_i32, %c0_i32_0 : i32, i32
  }
  func.func @transform_11(%arg0: i32) -> (i32, i32) {
    %c0_i32 = arith.constant 0 : i32
    %c0_i32_0 = arith.constant 0 : i32
    %c0_i32_1 = arith.constant 0 : i32
    return %c0_i32, %c0_i32_0 : i32, i32
  }
  func.func @transform_12(%arg0: i32) -> (i32, i32, i32) {
    %c0_i32 = arith.constant 0 : i32
    %c0_i32_0 = arith.constant 0 : i32
    %c0_i32_1 = arith.constant 0 : i32
    return %arg0, %c0_i32, %c0_i32_0 : i32, i32, i32
  }
}

</mosaic_0001>

<llo_original>
// kernel: tpu_custom_call.1
$region0: #{tpu_custom_call.1}
  #allocation0 [shape = 'u32[]', space=smem, size = 0x4, offset = 0x4, fixed_abs, tag = 'smem constant byte address 0x4 - core index']
  #allocation1 [shape = 'u32[144,128]{1,0:T(1,128)}', space=vmem, size = 0x12000, scoped, tag = 'internal scratch']
  %s0 = inlined_call_operand.vmem [shape: f32[2,32,64], index: 0, kind: input, shape index: {}]
  %s1 = inlined_call_operand.vmem [shape: f32[1,64], index: 1, kind: input, shape index: {}]
  %s2 = inlined_call_operand.vmem [shape: f32[1,64], index: 2, kind: input, shape index: {}]
  %s3 = inlined_call_operand.vmem [shape: bf16[64,192], index: 3, kind: input, shape index: {}]
  %s4 = inlined_call_operand.hbm [shape: bf16[64,64], index: 4, kind: input, shape index: {}]
  %s5 = inlined_call_operand.vmem [shape: f32[1,64], index: 5, kind: input, shape index: {}]
  %s6 = inlined_call_operand.vmem [shape: f32[1,64], index: 6, kind: input, shape index: {}]
  %s7 = inlined_call_operand.vmem [shape: f32[1,64], index: 7, kind: input, shape index: {}]
  %s8 = inlined_call_operand.vmem [shape: bf16[64,256], index: 8, kind: input, shape index: {}]
  %s9 = inlined_call_operand.vmem [shape: f32[1,256], index: 9, kind: input, shape index: {}]
  %s10 = inlined_call_operand.vmem [shape: bf16[256,64], index: 10, kind: input, shape index: {}]
  %s11 = inlined_call_operand.vmem [shape: f32[1,64], index: 11, kind: input, shape index: {}]
  %s12 = inlined_call_operand.hbm [shape: f32[2,32,64], index: 12, kind: output, shape index: {}]
  %s13 = sld [smem:[#allocation0]]
  $region62: #{tpu_custom_call.1} parent=0
    _
  %s15 = ssub.s32 1, %s13
  %s16 = scalar_select 0, %s15, %s13
  $region1: #{tpu_custom_call.1} parent=0
    #allocation2 [shape = 'u8[16384]{0}', space=vmem, size = 0x4000, scoped, tag = 'input window, operand 4, single buffered']
    #allocation3 [shape = 's32[1]{0}', space=sflag, size = 0x4, scoped, tag = 'scoped memory for tpu_custom_call.1']
    #allocation4 [shape = 's32[1]{0}', space=sflag, size = 0x4, scoped, tag = 'scoped memory for tpu_custom_call.1']
    #allocation5 [shape = 'u8[32768]{0}', space=vmem, size = 0x8000, scoped, tag = 'output window, operand 0, single buffered']
    %17 = vsyncpa [#allocation3], 0
    %18 = vsyncpa [#allocation4], 0
    // Predicated region
    $region2: #{tpu_custom_call.1} parent=1 // pred_check
      _
    $region3: #{tpu_custom_call.1} parent=1 // pred_check_branch
      %20 = sbr.rel (0) target = $region5
    $region4: #{tpu_custom_call.1} parent=1 // pred_region
      _
    $region5: #{tpu_custom_call.1} parent=1 // pred_fallthru
      _
    // Predicated region
    $region6: #{tpu_custom_call.1} parent=1 // pred_check
      _
    $region7: #{tpu_custom_call.1} parent=1 // pred_check_branch
      %22 = sbr.rel (0) target = $region9
    $region8: #{tpu_custom_call.1} parent=1 // pred_region
      _
    $region9: #{tpu_custom_call.1} parent=1 // pred_fallthru
      _
    // Predicated region
    $region10: #{tpu_custom_call.1} parent=1 // pred_check
      _
    $region11: #{tpu_custom_call.1} parent=1 // pred_check_branch
      %24 = sbr.rel (0) target = $region13
    $region12: #{tpu_custom_call.1} parent=1 // pred_region
      _
    $region13: #{tpu_custom_call.1} parent=1 // pred_fallthru
      _
    // Predicated region
    $region14: #{tpu_custom_call.1} parent=1 // pred_check
      _
    $region15: #{tpu_custom_call.1} parent=1 // pred_check_branch
      %26 = sbr.rel (0) target = $region17
    $region16: #{tpu_custom_call.1} parent=1 // pred_region
      _
    $region17: #{tpu_custom_call.1} parent=1 // pred_fallthru
      _
    // Predicated region
    $region18: #{tpu_custom_call.1} parent=1 // pred_check
      _
    $region19: #{tpu_custom_call.1} parent=1 // pred_check_branch
      %28 = sbr.rel (0) target = $region21
    $region20: #{tpu_custom_call.1} parent=1 // pred_region
      %s30 = ssub.s32 512, 512
      %31 = vsyncadd [#allocation3], %s30
      %s32 = sshll.u32 [#allocation2], 4
      %s33 = int_to_ptr.vmem [resolvable:$true] %s32
      %38 = dma.hbm_to_vmem [thread:$0]  %s4, 512, %s33, [#allocation3], 64, 64, 4
    $region21: #{tpu_custom_call.1} parent=1 // pred_fallthru
      _
    // Predicated region
    $region22: #{tpu_custom_call.1} parent=1 // pred_check
      _
    $region23: #{tpu_custom_call.1} parent=1 // pred_check_branch
      %40 = sbr.rel (0) target = $region25
    $region24: #{tpu_custom_call.1} parent=1 // pred_region
      _
    $region25: #{tpu_custom_call.1} parent=1 // pred_fallthru
      _
    // Predicated region
    $region26: #{tpu_custom_call.1} parent=1 // pred_check
      _
    $region27: #{tpu_custom_call.1} parent=1 // pred_check_branch
      %42 = sbr.rel (0) target = $region29
    $region28: #{tpu_custom_call.1} parent=1 // pred_region
      _
    $region29: #{tpu_custom_call.1} parent=1 // pred_fallthru
      _
    // Predicated region
    $region30: #{tpu_custom_call.1} parent=1 // pred_check
      _
    $region31: #{tpu_custom_call.1} parent=1 // pred_check_branch
      %44 = sbr.rel (0) target = $region33
    $region32: #{tpu_custom_call.1} parent=1 // pred_region
      _
    $region33: #{tpu_custom_call.1} parent=1 // pred_fallthru
      _
    // Predicated region
    $region34: #{tpu_custom_call.1} parent=1 // pred_check
      _
    $region35: #{tpu_custom_call.1} parent=1 // pred_check_branch
      %46 = sbr.rel (0) target = $region37
    $region36: #{tpu_custom_call.1} parent=1 // pred_region
      _
    $region37: #{tpu_custom_call.1} parent=1 // pred_fallthru
      _
    // Predicated region
    $region38: #{tpu_custom_call.1} parent=1 // pred_check
      _
    $region39: #{tpu_custom_call.1} parent=1 // pred_check_branch
      %48 = sbr.rel (0) target = $region41
    $region40: #{tpu_custom_call.1} parent=1 // pred_region
      _
    $region41: #{tpu_custom_call.1} parent=1 // pred_fallthru
      _
    // Predicated region
    $region42: #{tpu_custom_call.1} parent=1 // pred_check
      _
    $region43: #{tpu_custom_call.1} parent=1 // pred_check_branch
      %50 = sbr.rel (0) target = $region45
    $region44: #{tpu_custom_call.1} parent=1 // pred_region
      _
    $region45: #{tpu_custom_call.1} parent=1 // pred_fallthru
      _
    // Predicated region
    $region46: #{tpu_custom_call.1} parent=1 // pred_check
      _
    $region47: #{tpu_custom_call.1} parent=1 // pred_check_branch
      %52 = sbr.rel (0) target = $region49
    $region48: #{tpu_custom_call.1} parent=1 // pred_region
      _
    $region49: #{tpu_custom_call.1} parent=1 // pred_fallthru
      _
    // Predicated region
    $region50: #{tpu_custom_call.1} parent=1 // pred_check
      _
    $region51: #{tpu_custom_call.1} parent=1 // pred_check_branch
      %54 = sbr.rel (0) target = $region53
    $region52: #{tpu_custom_call.1} parent=1 // pred_region
      %55 = dma.done [#allocation3], 512
    $region53: #{tpu_custom_call.1} parent=1 // pred_fallthru
      _
    %v57 = vld [vmem:[%s0] sm:$0xff]
    %v58 = vld [vmem:[%s0 + $0x8] sm:$0xff]
    %v59 = vld [vmem:[%s0 + $0x10] sm:$0xff]
    %v60 = vld [vmem:[%s0 + $0x18] sm:$0xff]
    %v61 = vld [vmem:[%s0 + $0x20] sm:$0xff]
    %v62 = vld [vmem:[%s0 + $0x28] sm:$0xff]
    %v63 = vld [vmem:[%s0 + $0x30] sm:$0xff]
    %v64 = vld [vmem:[%s0 + $0x38] sm:$0xff]
    %v65 = vld [vmem:[%s1] sm:$0x1]
    %v66 = vld [vmem:[%s2] sm:$0x1]
    %vm67 = vcmask 523264
    %v68 = vsel %vm67, %v57, 0.0
    %69 = vadd.xlane.f32.xlu0 %v68
    %v70 = vpop.xlane.xlu0 %69
    %v71 = vsel %vm67, %v58, 0.0
    %72 = vadd.xlane.f32.xlu0 %v71
    %v73 = vpop.xlane.xlu0 %72
    %v74 = vsel %vm67, %v59, 0.0
    %75 = vadd.xlane.f32.xlu0 %v74
    %v76 = vpop.xlane.xlu0 %75
    %v77 = vsel %vm67, %v60, 0.0
    %78 = vadd.xlane.f32.xlu0 %v77
    %v79 = vpop.xlane.xlu0 %78
    %v80 = vsel %vm67, %v61, 0.0
    %81 = vadd.xlane.f32.xlu0 %v80
    %v82 = vpop.xlane.xlu0 %81
    %v83 = vsel %vm67, %v62, 0.0
    %84 = vadd.xlane.f32.xlu0 %v83
    %v85 = vpop.xlane.xlu0 %84
    %v86 = vsel %vm67, %v63, 0.0
    %87 = vadd.xlane.f32.xlu0 %v86
    %v88 = vpop.xlane.xlu0 %87
    %v89 = vsel %vm67, %v64, 0.0
    %90 = vadd.xlane.f32.xlu0 %v89
    %v91 = vpop.xlane.xlu0 %90
    %v92 = vrcp.pop 64.0
    %v93 = vmul.f32 %v70, %v92
    %v94 = vmul.f32 %v73, %v92
    %v95 = vmul.f32 %v76, %v92
    %v96 = vmul.f32 %v79, %v92
    %v97 = vmul.f32 %v82, %v92
    %v98 = vmul.f32 %v85, %v92
    %v99 = vmul.f32 %v88, %v92
    %v100 = vmul.f32 %v91, %v92
    %v101 = vsub.f32 %v57, %v93
    %v102 = vsub.f32 %v58, %v94
    %v103 = vsub.f32 %v59, %v95
    %v104 = vsub.f32 %v60, %v96
    %v105 = vsub.f32 %v61, %v97
    %v106 = vsub.f32 %v62, %v98
    %v107 = vsub.f32 %v63, %v99
    %v108 = vsub.f32 %v64, %v100
    %v109 = vmul.f32 %v101, %v101
    %v110 = vmul.f32 %v102, %v102
    %v111 = vmul.f32 %v103, %v103
    %v112 = vmul.f32 %v104, %v104
    %v113 = vmul.f32 %v105, %v105
    %v114 = vmul.f32 %v106, %v106
    %v115 = vmul.f32 %v107, %v107
    %v116 = vmul.f32 %v108, %v108
    %v117 = vsel %vm67, %v109, 0.0
    %118 = vadd.xlane.f32.xlu0 %v117
    %v119 = vpop.xlane.xlu0 %118
    %v120 = vsel %vm67, %v110, 0.0
    %121 = vadd.xlane.f32.xlu0 %v120
    %v122 = vpop.xlane.xlu0 %121
    %v123 = vsel %vm67, %v111, 0.0
    %124 = vadd.xlane.f32.xlu0 %v123
    %v125 = vpop.xlane.xlu0 %124
    %v126 = vsel %vm67, %v112, 0.0
    %127 = vadd.xlane.f32.xlu0 %v126
    %v128 = vpop.xlane.xlu0 %127
    %v129 = vsel %vm67, %v113, 0.0
    %130 = vadd.xlane.f32.xlu0 %v129
    %v131 = vpop.xlane.xlu0 %130
    %v132 = vsel %vm67, %v114, 0.0
    %133 = vadd.xlane.f32.xlu0 %v132
    %v134 = vpop.xlane.xlu0 %133
    %v135 = vsel %vm67, %v115, 0.0
    %136 = vadd.xlane.f32.xlu0 %v135
    %v137 = vpop.xlane.xlu0 %136
    %v138 = vsel %vm67, %v116, 0.0
    %139 = vadd.xlane.f32.xlu0 %v138
    %v140 = vpop.xlane.xlu0 %139
    %v141 = vmul.f32 %v119, %v92
    %v142 = vmul.f32 %v122, %v92
    %v143 = vmul.f32 %v125, %v92
    %v144 = vmul.f32 %v128, %v92
    %v145 = vmul.f32 %v131, %v92
    %v146 = vmul.f32 %v134, %v92
    %v147 = vmul.f32 %v137, %v92
    %v148 = vmul.f32 %v140, %v92
    %v149 = vadd.f32 %v141, 1e-05
    %v150 = vadd.f32 %v142, 1e-05
    %v151 = vadd.f32 %v143, 1e-05
    %v152 = vadd.f32 %v144, 1e-05
    %v153 = vadd.f32 %v145, 1e-05
    %v154 = vadd.f32 %v146, 1e-05
    %v155 = vadd.f32 %v147, 1e-05
    %v156 = vadd.f32 %v148, 1e-05
    %v157 = vrsqrt.pop %v149
    %v158 = vrsqrt.pop %v150
    %v159 = vrsqrt.pop %v151
    %v160 = vrsqrt.pop %v152
    %v161 = vrsqrt.pop %v153
    %v162 = vrsqrt.pop %v154
    %v163 = vrsqrt.pop %v155
    %v164 = vrsqrt.pop %v156
    %v165 = vmul.f32 %v101, %v157
    %v166 = vmul.f32 %v102, %v158
    %v167 = vmul.f32 %v103, %v159
    %v168 = vmul.f32 %v104, %v160
    %v169 = vmul.f32 %v105, %v161
    %v170 = vmul.f32 %v106, %v162
    %v171 = vmul.f32 %v107, %v163
    %v172 = vmul.f32 %v108, %v164
    %v174 = vlaneseq
    %v175 = vshrl.u32 %v174, 7
    %v176 = vsub.s32 0, %v175
    %v177 = vrot.slane %v65, %v176
    %v179 = vmul.f32 %v165, %v177
    %v180 = vmul.f32 %v166, %v177
    %v181 = vmul.f32 %v167, %v177
    %v182 = vmul.f32 %v168, %v177
    %v183 = vmul.f32 %v169, %v177
    %v184 = vmul.f32 %v170, %v177
    %v185 = vmul.f32 %v171, %v177
    %v186 = vmul.f32 %v172, %v177
    %v188 = vlaneseq
    %v189 = vshrl.u32 %v188, 7
    %v190 = vsub.s32 0, %v189
    %v191 = vrot.slane %v66, %v190
    %v193 = vadd.f32 %v179, %v191
    %v194 = vadd.f32 %v180, %v191
    %v195 = vadd.f32 %v181, %v191
    %v196 = vadd.f32 %v182, %v191
    %v197 = vadd.f32 %v183, %v191
    %v198 = vadd.f32 %v184, %v191
    %v199 = vadd.f32 %v185, %v191
    %v200 = vadd.f32 %v186, %v191
    %v201 = vpack.c.bf16 %v194, %v193
    %v202 = vpack.c.bf16 %v196, %v195
    %v203 = vpack.c.bf16 %v198, %v197
    %v204 = vpack.c.bf16 %v200, %v199
    %v205 = vld [vmem:[%s3] sm:$0xff]
    %v206 = vld [vmem:[%s3 + $0x8] sm:$0xff]
    %v207 = vld [vmem:[%s3 + $0x10] sm:$0xff]
    %v208 = vld [vmem:[%s3 + $0x18] sm:$0xff]
    %v209 = vld [vmem:[%s3 + $0x20] sm:$0xff]
    %v210 = vld [vmem:[%s3 + $0x28] sm:$0xff]
    %v211 = vld [vmem:[%s3 + $0x30] sm:$0xff]
    %v212 = vld [vmem:[%s3 + $0x38] sm:$0xff]
    %v221 = vunpack.c.l.b16 %v205
    %v222 = vunpack.c.h.b16 %v205
    %v223 = vunpack.c.l.b16 %v206
    %v224 = vunpack.c.h.b16 %v206
    %v225 = vunpack.c.l.b16 %v207
    %v226 = vunpack.c.h.b16 %v207
    %v227 = vunpack.c.l.b16 %v208
    %v228 = vunpack.c.h.b16 %v208
    %v229 = vunpack.c.l.b16 %v209
    %v230 = vunpack.c.h.b16 %v209
    %v231 = vunpack.c.l.b16 %v210
    %v232 = vunpack.c.h.b16 %v210
    %v233 = vunpack.c.l.b16 %v211
    %v234 = vunpack.c.h.b16 %v211
    %v235 = vunpack.c.l.b16 %v212
    %v236 = vunpack.c.h.b16 %v212
    %v237 = vpack.c.b16 %v223, %v221
    %v238 = vpack.c.b16 %v224, %v222
    %v239 = vpack.c.b16 %v227, %v225
    %v240 = vpack.c.b16 %v228, %v226
    %v241 = vpack.c.b16 %v231, %v229
    %v242 = vpack.c.b16 %v232, %v230
    %v243 = vpack.c.b16 %v235, %v233
    %v244 = vpack.c.b16 %v236, %v234
    %v254 = vsel %vm67, %v201, 0
    %v257 = vsel %vm67, %v202, 0
    %v260 = vsel %vm67, %v203, 0
    %v263 = vsel %vm67, %v204, 0
    %265 = vmatprep.subr.bf16.mxu0 %v238
    %266 = vmatpush1.bf16.msra.mxu0 %v237
    %267 = vmatprep.subr.bf16.mxu0 %v240
    %268 = vmatpush1.bf16.msra.mxu0 %v239
    %269 = vmatprep.subr.bf16.mxu0 %v242
    %270 = vmatpush1.bf16.msra.mxu0 %v241
    %271 = vmatprep.subr.bf16.mxu0 %v244
    %272 = vmatpush1.bf16.msra.mxu0 %v243
    %273 = vmatprep.subr.bf16.mxu0 0
    %274 = vmatpush1.bf16.msra.mxu0 0
    %275 = vmatprep.subr.bf16.mxu0 0
    %276 = vmatpush1.bf16.msra.mxu0 0
    %277 = vmatprep.subr.bf16.mxu0 0
    %278 = vmatpush1.bf16.msra.mxu0 0
    %279 = vmatprep.subr.bf16.mxu0 0
    %280 = vmatpush1.bf16.msra.mxu0 0
    %281 = vmatprep.subr.bf16.mxu0 0
    %282 = vmatpush1.bf16.msra.mxu0 0
    %283 = vmatprep.subr.bf16.mxu0 0
    %284 = vmatpush1.bf16.msra.mxu0 0
    %285 = vmatprep.subr.bf16.mxu0 0
    %286 = vmatpush1.bf16.msra.mxu0 0
    %287 = vmatprep.subr.bf16.mxu0 0
    %288 = vmatpush1.bf16.msra.mxu0 0
    %289 = vmatprep.subr.bf16.mxu0 0
    %290 = vmatpush1.bf16.msra.mxu0 0
    %291 = vmatprep.subr.bf16.mxu0 0
    %292 = vmatpush1.bf16.msra.mxu0 0
    %293 = vmatprep.subr.bf16.mxu0 0
    %294 = vmatpush1.bf16.msra.mxu0 0
    %295 = vmatprep.subr.bf16.mxu0 0
    %296 = vmatpush1.bf16.msra.mxu0 0
    %297 = vmatprep.mubr.bf16.mxu0 0
    %298 = vmatmul.mubr.bf16.gmra.mrb[0].mxu0 %v254
    %v299 = vpop.f32.mrb[0].mxu0
    %v300 = vadd.f32 0.0, %v299
    %v301 = vpop.f32.mrb[0].mxu0
    %v302 = vadd.f32 0.0, %v301
    %v303 = vpop.f32.mrb[0].mxu0
    %v304 = vadd.f32 0.0, %v303
    %v305 = vpop.f32.mrb[0].mxu0
    %v306 = vadd.f32 0.0, %v305
    %307 = vmatprep.mubr.bf16.mxu0 0
    %308 = vmatmul.mubr.bf16.gmra.mrb[0].mxu0 %v257
    %v309 = vpop.f32.mrb[0].mxu0
    %v310 = vadd.f32 0.0, %v309
    %v311 = vpop.f32.mrb[0].mxu0
    %v312 = vadd.f32 0.0, %v311
    %v313 = vpop.f32.mrb[0].mxu0
    %v314 = vadd.f32 0.0, %v313
    %v315 = vpop.f32.mrb[0].mxu0
    %v316 = vadd.f32 0.0, %v315
    %317 = vmatprep.mubr.bf16.mxu0 0
    %318 = vmatmul.mubr.bf16.gmra.mrb[0].mxu0 %v260
    %v319 = vpop.f32.mrb[0].mxu0
    %v320 = vadd.f32 0.0, %v319
    %v321 = vpop.f32.mrb[0].mxu0
    %v322 = vadd.f32 0.0, %v321
    %v323 = vpop.f32.mrb[0].mxu0
    %v324 = vadd.f32 0.0, %v323
    %v325 = vpop.f32.mrb[0].mxu0
    %v326 = vadd.f32 0.0, %v325
    %327 = vmatprep.mubr.bf16.mxu0 0
    %328 = vmatmul.mubr.bf16.gmra.mrb[0].mxu0 %v263
    %v329 = vpop.f32.mrb[0].mxu0
    %v330 = vadd.f32 0.0, %v329
    %v331 = vpop.f32.mrb[0].mxu0
    %v332 = vadd.f32 0.0, %v331
    %v333 = vpop.f32.mrb[0].mxu0
    %v334 = vadd.f32 0.0, %v333
    %v335 = vpop.f32.mrb[0].mxu0
    %v336 = vadd.f32 0.0, %v335
    %337 = vdwg.mxu0
    %v338 = vpack.c.bf16 %v304, %v300
    %v339 = vpack.c.bf16 %v306, %v302
    %v340 = vpack.c.bf16 %v314, %v310
    %v341 = vpack.c.bf16 %v316, %v312
    %v342 = vpack.c.bf16 %v324, %v320
    %v343 = vpack.c.bf16 %v326, %v322
    %v344 = vpack.c.bf16 %v334, %v330
    %v345 = vpack.c.bf16 %v336, %v332
    %v346 = vlaneseq
    %v347 = vshrl.u32 %v346, 7
    %v348 = vadd.s32 %v347, 8
    %v349 = vadd.s32 %v347, 16
    %v350 = vadd.s32 %v347, 24
    %v351 = vlaneseq
    %v352 = vand.u32 %v351, 127
    %vm353 = vcmp.ge.s32.totalorder %v347, %v352
    %vm354 = vcmp.ge.s32.totalorder %v348, %v352
    %vm355 = vcmp.ge.s32.totalorder %v349, %v352
    %vm356 = vcmp.ge.s32.totalorder %v350, %v352
    %359 = vrot.lane.b32.xlu0 %v338, 64
    %v360 = vpop.permute.xlu0 %359
    %361 = vrot.lane.b32.xlu0 %v340, 64
    %v362 = vpop.permute.xlu0 %361
    %vm363 = vcmask 130048
    %v365 = vsel %vm363, %v338, 0
    %v368 = vsel %vm363, %v340, 0
    %v371 = vsel %vm363, %v360, 0
    %v374 = vsel %vm363, %v362, 0
    %376 = vmatprep.subr.bf16.mxu0 0
    %377 = vmatpush1.bf16.xpose.msra.mxu0 %v371
    %378 = vmatprep.subr.bf16.mxu0 0
    %379 = vmatpush1.bf16.xpose.msra.mxu0 %v374
    %380 = vmatprep.subr.bf16.mxu0 0
    %381 = vmatpush1.bf16.xpose.msra.mxu0 0
    %382 = vmatprep.subr.bf16.mxu0 0
    %383 = vmatpush1.bf16.xpose.msra.mxu0 0
    %384 = vmatprep.subr.bf16.mxu0 0
    %385 = vmatpush1.bf16.xpose.msra.mxu0 0
    %386 = vmatprep.subr.bf16.mxu0 0
    %387 = vmatpush1.bf16.xpose.msra.mxu0 0
    %388 = vmatprep.subr.bf16.mxu0 0
    %389 = vmatpush1.bf16.xpose.msra.mxu0 0
    %390 = vmatprep.subr.bf16.mxu0 0
    %391 = vmatpush1.bf16.xpose.msra.mxu0 0
    %392 = vmatprep.subr.bf16.mxu0 0
    %393 = vmatpush1.bf16.xpose.msra.mxu0 0
    %394 = vmatprep.subr.bf16.mxu0 0
    %395 = vmatpush1.bf16.xpose.msra.mxu0 0
    %396 = vmatprep.subr.bf16.mxu0 0
    %397 = vmatpush1.bf16.xpose.msra.mxu0 0
    %398 = vmatprep.subr.bf16.mxu0 0
    %399 = vmatpush1.bf16.xpose.msra.mxu0 0
    %400 = vmatprep.subr.bf16.mxu0 0
    %401 = vmatpush1.bf16.xpose.msra.mxu0 0
    %402 = vmatprep.subr.bf16.mxu0 0
    %403 = vmatpush1.bf16.xpose.msra.mxu0 0
    %404 = vmatprep.subr.bf16.mxu0 0
    %405 = vmatpush1.bf16.xpose.msra.mxu0 0
    %406 = vmatprep.subr.bf16.mxu0 0
    %407 = vmatpush1.bf16.xpose.msra.mxu0 0
    %408 = vmatprep.mubr.bf16.mxu0 0
    %409 = vmatmul.mubr.bf16.gmra.mrb[0].mxu0 %v365
    %v410 = vpop.f32.mrb[0].mxu0
    %v411 = vadd.f32 0.0, %v410
    %v412 = vpop.f32.mrb[0].mxu0
    %v413 = vpop.f32.mrb[0].mxu0
    %v414 = vadd.f32 0.0, %v413
    %v415 = vpop.f32.mrb[0].mxu0
    %416 = vmatprep.mubr.bf16.mxu0 0
    %417 = vmatmul.mubr.bf16.gmra.mrb[0].mxu0 %v368
    %v418 = vpop.f32.mrb[0].mxu0
    %v419 = vadd.f32 0.0, %v418
    %v420 = vpop.f32.mrb[0].mxu0
    %v421 = vpop.f32.mrb[0].mxu0
    %v422 = vadd.f32 0.0, %v421
    %v423 = vpop.f32.mrb[0].mxu0
    %424 = vdwg.mxu0
    %427 = vrot.lane.b32.xlu0 %v342, 64
    %v428 = vpop.permute.xlu0 %427
    %429 = vrot.lane.b32.xlu0 %v344, 64
    %v430 = vpop.permute.xlu0 %429
    %v432 = vsel %vm363, %v342, 0
    %v435 = vsel %vm363, %v344, 0
    %v438 = vsel %vm363, %v428, 0
    %v441 = vsel %vm363, %v430, 0
    %443 = vmatprep.subr.bf16.mxu0 0
    %444 = vmatpush1.bf16.xpose.msra.mxu0 %v438
    %445 = vmatprep.subr.bf16.mxu0 0
    %446 = vmatpush1.bf16.xpose.msra.mxu0 %v441
    %447 = vmatprep.subr.bf16.mxu0 0
    %448 = vmatpush1.bf16.xpose.msra.mxu0 0
    %449 = vmatprep.subr.bf16.mxu0 0
    %450 = vmatpush1.bf16.xpose.msra.mxu0 0
    %451 = vmatprep.subr.bf16.mxu0 0
    %452 = vmatpush1.bf16.xpose.msra.mxu0 0
    %453 = vmatprep.subr.bf16.mxu0 0
    %454 = vmatpush1.bf16.xpose.msra.mxu0 0
    %455 = vmatprep.subr.bf16.mxu0 0
    %456 = vmatpush1.bf16.xpose.msra.mxu0 0
    %457 = vmatprep.subr.bf16.mxu0 0
    %458 = vmatpush1.bf16.xpose.msra.mxu0 0
    %459 = vmatprep.subr.bf16.mxu0 0
    %460 = vmatpush1.bf16.xpose.msra.mxu0 0
    %461 = vmatprep.subr.bf16.mxu0 0
    %462 = vmatpush1.bf16.xpose.msra.mxu0 0
    %463 = vmatprep.subr.bf16.mxu0 0
    %464 = vmatpush1.bf16.xpose.msra.mxu0 0
    %465 = vmatprep.subr.bf16.mxu0 0
    %466 = vmatpush1.bf16.xpose.msra.mxu0 0
    %467 = vmatprep.subr.bf16.mxu0 0
    %468 = vmatpush1.bf16.xpose.msra.mxu0 0
    %469 = vmatprep.subr.bf16.mxu0 0
    %470 = vmatpush1.bf16.xpose.msra.mxu0 0
    %471 = vmatprep.subr.bf16.mxu0 0
    %472 = vmatpush1.bf16.xpose.msra.mxu0 0
    %473 = vmatprep.subr.bf16.mxu0 0
    %474 = vmatpush1.bf16.xpose.msra.mxu0 0
    %475 = vmatprep.mubr.bf16.mxu0 0
    %476 = vmatmul.mubr.bf16.gmra.mrb[0].mxu0 %v432
    %v477 = vpop.f32.mrb[0].mxu0
    %v478 = vadd.f32 0.0, %v477
    %v479 = vpop.f32.mrb[0].mxu0
    %v480 = vpop.f32.mrb[0].mxu0
    %v481 = vadd.f32 0.0, %v480
    %v482 = vpop.f32.mrb[0].mxu0
    %483 = vmatprep.mubr.bf16.mxu0 0
    %484 = vmatmul.mubr.bf16.gmra.mrb[0].mxu0 %v435
    %v485 = vpop.f32.mrb[0].mxu0
    %v486 = vadd.f32 0.0, %v485
    %v487 = vpop.f32.mrb[0].mxu0
    %v488 = vpop.f32.mrb[0].mxu0
    %v489 = vadd.f32 0.0, %v488
    %v490 = vpop.f32.mrb[0].mxu0
    %491 = vdwg.mxu0
    %v492 = vsel %vm353, 1, 0
    %v493 = vsel %vm354, 1, 0
    %v494 = vsel %vm355, 1, 0
    %v495 = vsel %vm356, 1, 0
    %vm496 = vcmp.eq.s32.totalorder %v492, 1
    %vm497 = vcmp.eq.s32.totalorder %v493, 1
    %vm498 = vcmp.eq.s32.totalorder %v494, 1
    %vm499 = vcmp.eq.s32.totalorder %v495, 1
    %v500 = vsel %vm496, %v411, -1e+30
    %v501 = vsel %vm497, %v414, -1e+30
    %v502 = vsel %vm498, %v419, -1e+30
    %v503 = vsel %vm499, %v422, -1e+30
    %v504 = vsel %vm496, %v478, -1e+30
    %v505 = vsel %vm497, %v481, -1e+30
    %v506 = vsel %vm498, %v486, -1e+30
    %v507 = vsel %vm499, %v489, -1e+30
    %vm508 = vcmask 261120
    %v509 = vsel %vm508, %v500, -inf
    %510 = vmax.xlane.f32.xlu0 %v509
    %v511 = vpop.xlane.xlu0 %510
    %v512 = vsel %vm508, %v501, -inf
    %513 = vmax.xlane.f32.xlu0 %v512
    %v514 = vpop.xlane.xlu0 %513
    %v515 = vsel %vm508, %v502, -inf
    %516 = vmax.xlane.f32.xlu0 %v515
    %v517 = vpop.xlane.xlu0 %516
    %v518 = vsel %vm508, %v503, -inf
    %519 = vmax.xlane.f32.xlu0 %v518
    %v520 = vpop.xlane.xlu0 %519
    %v521 = vsel %vm508, %v504, -inf
    %522 = vmax.xlane.f32.xlu0 %v521
    %v523 = vpop.xlane.xlu0 %522
    %v524 = vsel %vm508, %v505, -inf
    %525 = vmax.xlane.f32.xlu0 %v524
    %v526 = vpop.xlane.xlu0 %525
    %v527 = vsel %vm508, %v506, -inf
    %528 = vmax.xlane.f32.xlu0 %v527
    %v529 = vpop.xlane.xlu0 %528
    %v530 = vsel %vm508, %v507, -inf
    %531 = vmax.xlane.f32.xlu0 %v530
    %v532 = vpop.xlane.xlu0 %531
    %v533 = vsub.f32 %v500, %v511
    %v534 = vsub.f32 %v501, %v514
    %v535 = vsub.f32 %v502, %v517
    %v536 = vsub.f32 %v503, %v520
    %v537 = vsub.f32 %v504, %v523
    %v538 = vsub.f32 %v505, %v526
    %v539 = vsub.f32 %v506, %v529
    %v540 = vsub.f32 %v507, %v532
    %v541 = vmul.f32 %v533, 1.442695
    %v542 = vpow.pop %v541
    %v543 = vmul.f32 %v534, 1.442695
    %v544 = vpow.pop %v543
    %v545 = vmul.f32 %v535, 1.442695
    %v546 = vpow.pop %v545
    %v547 = vmul.f32 %v536, 1.442695
    %v548 = vpow.pop %v547
    %v549 = vmul.f32 %v537, 1.442695
    %v550 = vpow.pop %v549
    %v551 = vmul.f32 %v538, 1.442695
    %v552 = vpow.pop %v551
    %v553 = vmul.f32 %v539, 1.442695
    %v554 = vpow.pop %v553
    %v555 = vmul.f32 %v540, 1.442695
    %v556 = vpow.pop %v555
    %v557 = vsel %vm508, %v542, 0.0
    %558 = vadd.xlane.f32.xlu0 %v557
    %v559 = vpop.xlane.xlu0 %558
    %v560 = vsel %vm508, %v544, 0.0
    %561 = vadd.xlane.f32.xlu0 %v560
    %v562 = vpop.xlane.xlu0 %561
    %v563 = vsel %vm508, %v546, 0.0
    %564 = vadd.xlane.f32.xlu0 %v563
    %v565 = vpop.xlane.xlu0 %564
    %v566 = vsel %vm508, %v548, 0.0
    %567 = vadd.xlane.f32.xlu0 %v566
    %v568 = vpop.xlane.xlu0 %567
    %v569 = vsel %vm508, %v550, 0.0
    %570 = vadd.xlane.f32.xlu0 %v569
    %v571 = vpop.xlane.xlu0 %570
    %v572 = vsel %vm508, %v552, 0.0
    %573 = vadd.xlane.f32.xlu0 %v572
    %v574 = vpop.xlane.xlu0 %573
    %v575 = vsel %vm508, %v554, 0.0
    %576 = vadd.xlane.f32.xlu0 %v575
    %v577 = vpop.xlane.xlu0 %576
    %v578 = vsel %vm508, %v556, 0.0
    %579 = vadd.xlane.f32.xlu0 %v578
    %v580 = vpop.xlane.xlu0 %579
    %v581 = vpack.c.bf16 %v544, %v542
    %v582 = vpack.c.bf16 %v548, %v546
    %v583 = vpack.c.bf16 %v552, %v550
    %v584 = vpack.c.bf16 %v556, %v554
    %v586 = vsel %vm508, %v581, 0
    %v589 = vsel %vm508, %v582, 0
    %591 = vmatprep.subr.bf16.mxu0 0
    %592 = vmatpush1.bf16.msra.mxu0 %v339
    %593 = vmatprep.subr.bf16.mxu0 0
    %594 = vmatpush1.bf16.msra.mxu0 %v341
    %595 = vmatprep.subr.bf16.mxu0 0
    %596 = vmatpush1.bf16.msra.mxu0 0
    %597 = vmatprep.subr.bf16.mxu0 0
    %598 = vmatpush1.bf16.msra.mxu0 0
    %599 = vmatprep.subr.bf16.mxu0 0
    %600 = vmatpush1.bf16.msra.mxu0 0
    %601 = vmatprep.subr.bf16.mxu0 0
    %602 = vmatpush1.bf16.msra.mxu0 0
    %603 = vmatprep.subr.bf16.mxu0 0
    %604 = vmatpush1.bf16.msra.mxu0 0
    %605 = vmatprep.subr.bf16.mxu0 0
    %606 = vmatpush1.bf16.msra.mxu0 0
    %607 = vmatprep.subr.bf16.mxu0 0
    %608 = vmatpush1.bf16.msra.mxu0 0
    %609 = vmatprep.subr.bf16.mxu0 0
    %610 = vmatpush1.bf16.msra.mxu0 0
    %611 = vmatprep.subr.bf16.mxu0 0
    %612 = vmatpush1.bf16.msra.mxu0 0
    %613 = vmatprep.subr.bf16.mxu0 0
    %614 = vmatpush1.bf16.msra.mxu0 0
    %615 = vmatprep.subr.bf16.mxu0 0
    %616 = vmatpush1.bf16.msra.mxu0 0
    %617 = vmatprep.subr.bf16.mxu0 0
    %618 = vmatpush1.bf16.msra.mxu0 0
    %619 = vmatprep.subr.bf16.mxu0 0
    %620 = vmatpush1.bf16.msra.mxu0 0
    %621 = vmatprep.subr.bf16.mxu0 0
    %622 = vmatpush1.bf16.msra.mxu0 0
    %623 = vmatprep.mubr.bf16.mxu0 0
    %624 = vmatmul.mubr.bf16.gmra.mrb[0].mxu0 %v586
    %v625 = vpop.f32.mrb[0].mxu0
    %v626 = vadd.f32 0.0, %v625
    %v627 = vpop.f32.mrb[0].mxu0
    %v628 = vpop.f32.mrb[0].mxu0
    %v629 = vadd.f32 0.0, %v628
    %v630 = vpop.f32.mrb[0].mxu0
    %631 = vmatprep.mubr.bf16.mxu0 0
    %632 = vmatmul.mubr.bf16.gmra.mrb[0].mxu0 %v589
    %v633 = vpop.f32.mrb[0].mxu0
    %v634 = vadd.f32 0.0, %v633
    %v635 = vpop.f32.mrb[0].mxu0
    %v636 = vpop.f32.mrb[0].mxu0
    %v637 = vadd.f32 0.0, %v636
    %v638 = vpop.f32.mrb[0].mxu0
    %639 = vdwg.mxu0
    %v641 = vsel %vm508, %v583, 0
    %v644 = vsel %vm508, %v584, 0
    %646 = vmatprep.subr.bf16.mxu0 0
    %647 = vmatpush1.bf16.msra.mxu0 %v343
    %648 = vmatprep.subr.bf16.mxu0 0
    %649 = vmatpush1.bf16.msra.mxu0 %v345
    %650 = vmatprep.subr.bf16.mxu0 0
    %651 = vmatpush1.bf16.msra.mxu0 0
    %652 = vmatprep.subr.bf16.mxu0 0
    %653 = vmatpush1.bf16.msra.mxu0 0
    %654 = vmatprep.subr.bf16.mxu0 0
    %655 = vmatpush1.bf16.msra.mxu0 0
    %656 = vmatprep.subr.bf16.mxu0 0
    %657 = vmatpush1.bf16.msra.mxu0 0
    %658 = vmatprep.subr.bf16.mxu0 0
    %659 = vmatpush1.bf16.msra.mxu0 0
    %660 = vmatprep.subr.bf16.mxu0 0
    %661 = vmatpush1.bf16.msra.mxu0 0
    %662 = vmatprep.subr.bf16.mxu0 0
    %663 = vmatpush1.bf16.msra.mxu0 0
    %664 = vmatprep.subr.bf16.mxu0 0
    %665 = vmatpush1.bf16.msra.mxu0 0
    %666 = vmatprep.subr.bf16.mxu0 0
    %667 = vmatpush1.bf16.msra.mxu0 0
    %668 = vmatprep.subr.bf16.mxu0 0
    %669 = vmatpush1.bf16.msra.mxu0 0
    %670 = vmatprep.subr.bf16.mxu0 0
    %671 = vmatpush1.bf16.msra.mxu0 0
    %672 = vmatprep.subr.bf16.mxu0 0
    %673 = vmatpush1.bf16.msra.mxu0 0
    %674 = vmatprep.subr.bf16.mxu0 0
    %675 = vmatpush1.bf16.msra.mxu0 0
    %676 = vmatprep.subr.bf16.mxu0 0
    %677 = vmatpush1.bf16.msra.mxu0 0
    %678 = vmatprep.mubr.bf16.mxu0 0
    %679 = vmatmul.mubr.bf16.gmra.mrb[0].mxu0 %v641
    %v680 = vpop.f32.mrb[0].mxu0
    %v681 = vadd.f32 0.0, %v680
    %v682 = vpop.f32.mrb[0].mxu0
    %v683 = vpop.f32.mrb[0].mxu0
    %v684 = vadd.f32 0.0, %v683
    %v685 = vpop.f32.mrb[0].mxu0
    %686 = vmatprep.mubr.bf16.mxu0 0
    %687 = vmatmul.mubr.bf16.gmra.mrb[0].mxu0 %v644
    %v688 = vpop.f32.mrb[0].mxu0
    %v689 = vadd.f32 0.0, %v688
    %v690 = vpop.f32.mrb[0].mxu0
    %v691 = vpop.f32.mrb[0].mxu0
    %v692 = vadd.f32 0.0, %v691
    %v693 = vpop.f32.mrb[0].mxu0
    %694 = vdwg.mxu0
    %v695 = vrcp.pop %v559
    %v696 = vrcp.pop %v562
    %v697 = vrcp.pop %v565
    %v698 = vrcp.pop %v568
    %v699 = vrcp.pop %v571
    %v700 = vrcp.pop %v574
    %v701 = vrcp.pop %v577
    %v702 = vrcp.pop %v580
    %v703 = vmul.f32 %v626, %v695
    %v704 = vmul.f32 %v629, %v696
    %v705 = vmul.f32 %v634, %v697
    %v706 = vmul.f32 %v637, %v698
    %v707 = vmul.f32 %v681, %v699
    %v708 = vmul.f32 %v684, %v700
    %v709 = vmul.f32 %v689, %v701
    %v710 = vmul.f32 %v692, %v702
    %711 = vrot.lane.b32.xlu0 %v338, 112
    %v712 = vpop.permute.xlu0 %711
    %713 = vrot.lane.b32.xlu0 %v340, 112
    %v714 = vpop.permute.xlu0 %713
    %715 = vrot.lane.b32.xlu0 %v338, 48
    %v716 = vpop.permute.xlu0 %715
    %717 = vrot.lane.b32.xlu0 %v340, 48
    %v718 = vpop.permute.xlu0 %717
    %v720 = vsel %vm363, %v712, 0
    %v723 = vsel %vm363, %v714, 0
    %v726 = vsel %vm363, %v716, 0
    %v729 = vsel %vm363, %v718, 0
    %731 = vmatprep.subr.bf16.mxu0 0
    %732 = vmatpush1.bf16.xpose.msra.mxu0 %v726
    %733 = vmatprep.subr.bf16.mxu0 0
    %734 = vmatpush1.bf16.xpose.msra.mxu0 %v729
    %735 = vmatprep.subr.bf16.mxu0 0
    %736 = vmatpush1.bf16.xpose.msra.mxu0 0
    %737 = vmatprep.subr.bf16.mxu0 0
    %738 = vmatpush1.bf16.xpose.msra.mxu0 0
    %739 = vmatprep.subr.bf16.mxu0 0
    %740 = vmatpush1.bf16.xpose.msra.mxu0 0
    %741 = vmatprep.subr.bf16.mxu0 0
    %742 = vmatpush1.bf16.xpose.msra.mxu0 0
    %743 = vmatprep.subr.bf16.mxu0 0
    %744 = vmatpush1.bf16.xpose.msra.mxu0 0
    %745 = vmatprep.subr.bf16.mxu0 0
    %746 = vmatpush1.bf16.xpose.msra.mxu0 0
    %747 = vmatprep.subr.bf16.mxu0 0
    %748 = vmatpush1.bf16.xpose.msra.mxu0 0
    %749 = vmatprep.subr.bf16.mxu0 0
    %750 = vmatpush1.bf16.xpose.msra.mxu0 0
    %751 = vmatprep.subr.bf16.mxu0 0
    %752 = vmatpush1.bf16.xpose.msra.mxu0 0
    %753 = vmatprep.subr.bf16.mxu0 0
    %754 = vmatpush1.bf16.xpose.msra.mxu0 0
    %755 = vmatprep.subr.bf16.mxu0 0
    %756 = vmatpush1.bf16.xpose.msra.mxu0 0
    %757 = vmatprep.subr.bf16.mxu0 0
    %758 = vmatpush1.bf16.xpose.msra.mxu0 0
    %759 = vmatprep.subr.bf16.mxu0 0
    %760 = vmatpush1.bf16.xpose.msra.mxu0 0
    %761 = vmatprep.subr.bf16.mxu0 0
    %762 = vmatpush1.bf16.xpose.msra.mxu0 0
    %763 = vmatprep.mubr.bf16.mxu0 0
    %764 = vmatmul.mubr.bf16.gmra.mrb[0].mxu0 %v720
    %v765 = vpop.f32.mrb[0].mxu0
    %v766 = vadd.f32 0.0, %v765
    %v767 = vpop.f32.mrb[0].mxu0
    %v768 = vpop.f32.mrb[0].mxu0
    %v769 = vadd.f32 0.0, %v768
    %v770 = vpop.f32.mrb[0].mxu0
    %771 = vmatprep.mubr.bf16.mxu0 0
    %772 = vmatmul.mubr.bf16.gmra.mrb[0].mxu0 %v723
    %v773 = vpop.f32.mrb[0].mxu0
    %v774 = vadd.f32 0.0, %v773
    %v775 = vpop.f32.mrb[0].mxu0
    %v776 = vpop.f32.mrb[0].mxu0
    %v777 = vadd.f32 0.0, %v776
    %v778 = vpop.f32.mrb[0].mxu0
    %779 = vdwg.mxu0
    %780 = vrot.lane.b32.xlu0 %v342, 112
    %v781 = vpop.permute.xlu0 %780
    %782 = vrot.lane.b32.xlu0 %v344, 112
    %v783 = vpop.permute.xlu0 %782
    %784 = vrot.lane.b32.xlu0 %v342, 48
    %v785 = vpop.permute.xlu0 %784
    %786 = vrot.lane.b32.xlu0 %v344, 48
    %v787 = vpop.permute.xlu0 %786
    %v789 = vsel %vm363, %v781, 0
    %v792 = vsel %vm363, %v783, 0
    %v795 = vsel %vm363, %v785, 0
    %v798 = vsel %vm363, %v787, 0
    %800 = vmatprep.subr.bf16.mxu0 0
    %801 = vmatpush1.bf16.xpose.msra.mxu0 %v795
    %802 = vmatprep.subr.bf16.mxu0 0
    %803 = vmatpush1.bf16.xpose.msra.mxu0 %v798
    %804 = vmatprep.subr.bf16.mxu0 0
    %805 = vmatpush1.bf16.xpose.msra.mxu0 0
    %806 = vmatprep.subr.bf16.mxu0 0
    %807 = vmatpush1.bf16.xpose.msra.mxu0 0
    %808 = vmatprep.subr.bf16.mxu0 0
    %809 = vmatpush1.bf16.xpose.msra.mxu0 0
    %810 = vmatprep.subr.bf16.mxu0 0
    %811 = vmatpush1.bf16.xpose.msra.mxu0 0
    %812 = vmatprep.subr.bf16.mxu0 0
    %813 = vmatpush1.bf16.xpose.msra.mxu0 0
    %814 = vmatprep.subr.bf16.mxu0 0
    %815 = vmatpush1.bf16.xpose.msra.mxu0 0
    %816 = vmatprep.subr.bf16.mxu0 0
    %817 = vmatpush1.bf16.xpose.msra.mxu0 0
    %818 = vmatprep.subr.bf16.mxu0 0
    %819 = vmatpush1.bf16.xpose.msra.mxu0 0
    %820 = vmatprep.subr.bf16.mxu0 0
    %821 = vmatpush1.bf16.xpose.msra.mxu0 0
    %822 = vmatprep.subr.bf16.mxu0 0
    %823 = vmatpush1.bf16.xpose.msra.mxu0 0
    %824 = vmatprep.subr.bf16.mxu0 0
    %825 = vmatpush1.bf16.xpose.msra.mxu0 0
    %826 = vmatprep.subr.bf16.mxu0 0
    %827 = vmatpush1.bf16.xpose.msra.mxu0 0
    %828 = vmatprep.subr.bf16.mxu0 0
    %829 = vmatpush1.bf16.xpose.msra.mxu0 0
    %830 = vmatprep.subr.bf16.mxu0 0
    %831 = vmatpush1.bf16.xpose.msra.mxu0 0
    %832 = vmatprep.mubr.bf16.mxu0 0
    %833 = vmatmul.mubr.bf16.gmra.mrb[0].mxu0 %v789
    %v834 = vpop.f32.mrb[0].mxu0
    %v835 = vadd.f32 0.0, %v834
    %v836 = vpop.f32.mrb[0].mxu0
    %v837 = vpop.f32.mrb[0].mxu0
    %v838 = vadd.f32 0.0, %v837
    %v839 = vpop.f32.mrb[0].mxu0
    %840 = vmatprep.mubr.bf16.mxu0 0
    %841 = vmatmul.mubr.bf16.gmra.mrb[0].mxu0 %v792
    %v842 = vpop.f32.mrb[0].mxu0
    %v843 = vadd.f32 0.0, %v842
    %v844 = vpop.f32.mrb[0].mxu0
    %v845 = vpop.f32.mrb[0].mxu0
    %v846 = vadd.f32 0.0, %v845
    %v847 = vpop.f32.mrb[0].mxu0
    %848 = vdwg.mxu0
    %v849 = vsel %vm496, %v766, -1e+30
    %v850 = vsel %vm497, %v769, -1e+30
    %v851 = vsel %vm498, %v774, -1e+30
    %v852 = vsel %vm499, %v777, -1e+30
    %v853 = vsel %vm496, %v835, -1e+30
    %v854 = vsel %vm497, %v838, -1e+30
    %v855 = vsel %vm498, %v843, -1e+30
    %v856 = vsel %vm499, %v846, -1e+30
    %v857 = vsel %vm508, %v849, -inf
    %858 = vmax.xlane.f32.xlu0 %v857
    %v859 = vpop.xlane.xlu0 %858
    %v860 = vsel %vm508, %v850, -inf
    %861 = vmax.xlane.f32.xlu0 %v860
    %v862 = vpop.xlane.xlu0 %861
    %v863 = vsel %vm508, %v851, -inf
    %864 = vmax.xlane.f32.xlu0 %v863
    %v865 = vpop.xlane.xlu0 %864
    %v866 = vsel %vm508, %v852, -inf
    %867 = vmax.xlane.f32.xlu0 %v866
    %v868 = vpop.xlane.xlu0 %867
    %v869 = vsel %vm508, %v853, -inf
    %870 = vmax.xlane.f32.xlu0 %v869
    %v871 = vpop.xlane.xlu0 %870
    %v872 = vsel %vm508, %v854, -inf
    %873 = vmax.xlane.f32.xlu0 %v872
    %v874 = vpop.xlane.xlu0 %873
    %v875 = vsel %vm508, %v855, -inf
    %876 = vmax.xlane.f32.xlu0 %v875
    %v877 = vpop.xlane.xlu0 %876
    %v878 = vsel %vm508, %v856, -inf
    %879 = vmax.xlane.f32.xlu0 %v878
    %v880 = vpop.xlane.xlu0 %879
    %v881 = vsub.f32 %v849, %v859
    %v882 = vsub.f32 %v850, %v862
    %v883 = vsub.f32 %v851, %v865
    %v884 = vsub.f32 %v852, %v868
    %v885 = vsub.f32 %v853, %v871
    %v886 = vsub.f32 %v854, %v874
    %v887 = vsub.f32 %v855, %v877
    %v888 = vsub.f32 %v856, %v880
    %v889 = vmul.f32 %v881, 1.442695
    %v890 = vpow.pop %v889
    %v891 = vmul.f32 %v882, 1.442695
    %v892 = vpow.pop %v891
    %v893 = vmul.f32 %v883, 1.442695
    %v894 = vpow.pop %v893
    %v895 = vmul.f32 %v884, 1.442695
    %v896 = vpow.pop %v895
    %v897 = vmul.f32 %v885, 1.442695
    %v898 = vpow.pop %v897
    %v899 = vmul.f32 %v886, 1.442695
    %v900 = vpow.pop %v899
    %v901 = vmul.f32 %v887, 1.442695
    %v902 = vpow.pop %v901
    %v903 = vmul.f32 %v888, 1.442695
    %v904 = vpow.pop %v903
    %v905 = vsel %vm508, %v890, 0.0
    %906 = vadd.xlane.f32.xlu0 %v905
    %v907 = vpop.xlane.xlu0 %906
    %v908 = vsel %vm508, %v892, 0.0
    %909 = vadd.xlane.f32.xlu0 %v908
    %v910 = vpop.xlane.xlu0 %909
    %v911 = vsel %vm508, %v894, 0.0
    %912 = vadd.xlane.f32.xlu0 %v911
    %v913 = vpop.xlane.xlu0 %912
    %v914 = vsel %vm508, %v896, 0.0
    %915 = vadd.xlane.f32.xlu0 %v914
    %v916 = vpop.xlane.xlu0 %915
    %v917 = vsel %vm508, %v898, 0.0
    %918 = vadd.xlane.f32.xlu0 %v917
    %v919 = vpop.xlane.xlu0 %918
    %v920 = vsel %vm508, %v900, 0.0
    %921 = vadd.xlane.f32.xlu0 %v920
    %v922 = vpop.xlane.xlu0 %921
    %v923 = vsel %vm508, %v902, 0.0
    %924 = vadd.xlane.f32.xlu0 %v923
    %v925 = vpop.xlane.xlu0 %924
    %v926 = vsel %vm508, %v904, 0.0
    %927 = vadd.xlane.f32.xlu0 %v926
    %v928 = vpop.xlane.xlu0 %927
    %v929 = vpack.c.bf16 %v892, %v890
    %v930 = vpack.c.bf16 %v896, %v894
    %v931 = vpack.c.bf16 %v900, %v898
    %v932 = vpack.c.bf16 %v904, %v902
    %935 = vrot.lane.b32.xlu0 %v339, 112
    %v936 = vpop.permute.xlu0 %935
    %937 = vrot.lane.b32.xlu0 %v341, 112
    %v938 = vpop.permute.xlu0 %937
    %v942 = vsel %vm508, %v929, 0
    %v945 = vsel %vm508, %v930, 0
    %947 = vmatprep.subr.bf16.mxu0 0
    %948 = vmatpush1.bf16.msra.mxu0 %v936
    %949 = vmatprep.subr.bf16.mxu0 0
    %950 = vmatpush1.bf16.msra.mxu0 %v938
    %951 = vmatprep.subr.bf16.mxu0 0
    %952 = vmatpush1.bf16.msra.mxu0 0
    %953 = vmatprep.subr.bf16.mxu0 0
    %954 = vmatpush1.bf16.msra.mxu0 0
    %955 = vmatprep.subr.bf16.mxu0 0
    %956 = vmatpush1.bf16.msra.mxu0 0
    %957 = vmatprep.subr.bf16.mxu0 0
    %958 = vmatpush1.bf16.msra.mxu0 0
    %959 = vmatprep.subr.bf16.mxu0 0
    %960 = vmatpush1.bf16.msra.mxu0 0
    %961 = vmatprep.subr.bf16.mxu0 0
    %962 = vmatpush1.bf16.msra.mxu0 0
    %963 = vmatprep.subr.bf16.mxu0 0
    %964 = vmatpush1.bf16.msra.mxu0 0
    %965 = vmatprep.subr.bf16.mxu0 0
    %966 = vmatpush1.bf16.msra.mxu0 0
    %967 = vmatprep.subr.bf16.mxu0 0
    %968 = vmatpush1.bf16.msra.mxu0 0
    %969 = vmatprep.subr.bf16.mxu0 0
    %970 = vmatpush1.bf16.msra.mxu0 0
    %971 = vmatprep.subr.bf16.mxu0 0
    %972 = vmatpush1.bf16.msra.mxu0 0
    %973 = vmatprep.subr.bf16.mxu0 0
    %974 = vmatpush1.bf16.msra.mxu0 0
    %975 = vmatprep.subr.bf16.mxu0 0
    %976 = vmatpush1.bf16.msra.mxu0 0
    %977 = vmatprep.subr.bf16.mxu0 0
    %978 = vmatpush1.bf16.msra.mxu0 0
    %979 = vmatprep.mubr.bf16.mxu0 0
    %980 = vmatmul.mubr.bf16.gmra.mrb[0].mxu0 %v942
    %v981 = vpop.f32.mrb[0].mxu0
    %v982 = vadd.f32 0.0, %v981
    %v983 = vpop.f32.mrb[0].mxu0
    %v984 = vpop.f32.mrb[0].mxu0
    %v985 = vadd.f32 0.0, %v984
    %v986 = vpop.f32.mrb[0].mxu0
    %987 = vmatprep.mubr.bf16.mxu0 0
    %988 = vmatmul.mubr.bf16.gmra.mrb[0].mxu0 %v945
    %v989 = vpop.f32.mrb[0].mxu0
    %v990 = vadd.f32 0.0, %v989
    %v991 = vpop.f32.mrb[0].mxu0
    %v992 = vpop.f32.mrb[0].mxu0
    %v993 = vadd.f32 0.0, %v992
    %v994 = vpop.f32.mrb[0].mxu0
    %995 = vdwg.mxu0
    %998 = vrot.lane.b32.xlu0 %v343, 112
    %v999 = vpop.permute.xlu0 %998
    %1000 = vrot.lane.b32.xlu0 %v345, 112
    %v1001 = vpop.permute.xlu0 %1000
    %v1005 = vsel %vm508, %v931, 0
    %v1008 = vsel %vm508, %v932, 0
    %1010 = vmatprep.subr.bf16.mxu0 0
    %1011 = vmatpush1.bf16.msra.mxu0 %v999
    %1012 = vmatprep.subr.bf16.mxu0 0
    %1013 = vmatpush1.bf16.msra.mxu0 %v1001
    %1014 = vmatprep.subr.bf16.mxu0 0
    %1015 = vmatpush1.bf16.msra.mxu0 0
    %1016 = vmatprep.subr.bf16.mxu0 0
    %1017 = vmatpush1.bf16.msra.mxu0 0
    %1018 = vmatprep.subr.bf16.mxu0 0
    %1019 = vmatpush1.bf16.msra.mxu0 0
    %1020 = vmatprep.subr.bf16.mxu0 0
    %1021 = vmatpush1.bf16.msra.mxu0 0
    %1022 = vmatprep.subr.bf16.mxu0 0
    %1023 = vmatpush1.bf16.msra.mxu0 0
    %1024 = vmatprep.subr.bf16.mxu0 0
    %1025 = vmatpush1.bf16.msra.mxu0 0
    %1026 = vmatprep.subr.bf16.mxu0 0
    %1027 = vmatpush1.bf16.msra.mxu0 0
    %1028 = vmatprep.subr.bf16.mxu0 0
    %1029 = vmatpush1.bf16.msra.mxu0 0
    %1030 = vmatprep.subr.bf16.mxu0 0
    %1031 = vmatpush1.bf16.msra.mxu0 0
    %1032 = vmatprep.subr.bf16.mxu0 0
    %1033 = vmatpush1.bf16.msra.mxu0 0
    %1034 = vmatprep.subr.bf16.mxu0 0
    %1035 = vmatpush1.bf16.msra.mxu0 0
    %1036 = vmatprep.subr.bf16.mxu0 0
    %1037 = vmatpush1.bf16.msra.mxu0 0
    %1038 = vmatprep.subr.bf16.mxu0 0
    %1039 = vmatpush1.bf16.msra.mxu0 0
    %1040 = vmatprep.subr.bf16.mxu0 0
    %1041 = vmatpush1.bf16.msra.mxu0 0
    %1042 = vmatprep.mubr.bf16.mxu0 0
    %1043 = vmatmul.mubr.bf16.gmra.mrb[0].mxu0 %v1005
    %v1044 = vpop.f32.mrb[0].mxu0
    %v1045 = vadd.f32 0.0, %v1044
    %v1046 = vpop.f32.mrb[0].mxu0
    %v1047 = vpop.f32.mrb[0].mxu0
    %v1048 = vadd.f32 0.0, %v1047
    %v1049 = vpop.f32.mrb[0].mxu0
    %1050 = vmatprep.mubr.bf16.mxu0 0
    %1051 = vmatmul.mubr.bf16.gmra.mrb[0].mxu0 %v1008
    %v1052 = vpop.f32.mrb[0].mxu0
    %v1053 = vadd.f32 0.0, %v1052
    %v1054 = vpop.f32.mrb[0].mxu0
    %v1055 = vpop.f32.mrb[0].mxu0
    %v1056 = vadd.f32 0.0, %v1055
    %v1057 = vpop.f32.mrb[0].mxu0
    %1058 = vdwg.mxu0
    %v1059 = vrcp.pop %v907
    %v1060 = vrcp.pop %v910
    %v1061 = vrcp.pop %v913
    %v1062 = vrcp.pop %v916
    %v1063 = vrcp.pop %v919
    %v1064 = vrcp.pop %v922
    %v1065 = vrcp.pop %v925
    %v1066 = vrcp.pop %v928
    %v1067 = vmul.f32 %v982, %v1059
    %v1068 = vmul.f32 %v985, %v1060
    %v1069 = vmul.f32 %v990, %v1061
    %v1070 = vmul.f32 %v993, %v1062
    %v1071 = vmul.f32 %v1045, %v1063
    %v1072 = vmul.f32 %v1048, %v1064
    %v1073 = vmul.f32 %v1053, %v1065
    %v1074 = vmul.f32 %v1056, %v1066
    %1075 = vrot.lane.b32.xlu0 %v338, 96
    %v1076 = vpop.permute.xlu0 %1075
    %1077 = vrot.lane.b32.xlu0 %v340, 96
    %v1078 = vpop.permute.xlu0 %1077
    %1079 = vrot.lane.b32.xlu0 %v338, 32
    %v1080 = vpop.permute.xlu0 %1079
    %1081 = vrot.lane.b32.xlu0 %v340, 32
    %v1082 = vpop.permute.xlu0 %1081
    %v1084 = vsel %vm363, %v1076, 0
    %v1087 = vsel %vm363, %v1078, 0
    %v1090 = vsel %vm363, %v1080, 0
    %v1093 = vsel %vm363, %v1082, 0
    %1095 = vmatprep.subr.bf16.mxu0 0
    %1096 = vmatpush1.bf16.xpose.msra.mxu0 %v1090
    %1097 = vmatprep.subr.bf16.mxu0 0
    %1098 = vmatpush1.bf16.xpose.msra.mxu0 %v1093
    %1099 = vmatprep.subr.bf16.mxu0 0
    %1100 = vmatpush1.bf16.xpose.msra.mxu0 0
    %1101 = vmatprep.subr.bf16.mxu0 0
    %1102 = vmatpush1.bf16.xpose.msra.mxu0 0
    %1103 = vmatprep.subr.bf16.mxu0 0
    %1104 = vmatpush1.bf16.xpose.msra.mxu0 0
    %1105 = vmatprep.subr.bf16.mxu0 0
    %1106 = vmatpush1.bf16.xpose.msra.mxu0 0
    %1107 = vmatprep.subr.bf16.mxu0 0
    %1108 = vmatpush1.bf16.xpose.msra.mxu0 0
    %1109 = vmatprep.subr.bf16.mxu0 0
    %1110 = vmatpush1.bf16.xpose.msra.mxu0 0
    %1111 = vmatprep.subr.bf16.mxu0 0
    %1112 = vmatpush1.bf16.xpose.msra.mxu0 0
    %1113 = vmatprep.subr.bf16.mxu0 0
    %1114 = vmatpush1.bf16.xpose.msra.mxu0 0
    %1115 = vmatprep.subr.bf16.mxu0 0
    %1116 = vmatpush1.bf16.xpose.msra.mxu0 0
    %1117 = vmatprep.subr.bf16.mxu0 0
    %1118 = vmatpush1.bf16.xpose.msra.mxu0 0
    %1119 = vmatprep.subr.bf16.mxu0 0
    %1120 = vmatpush1.bf16.xpose.msra.mxu0 0
    %1121 = vmatprep.subr.bf16.mxu0 0
    %1122 = vmatpush1.bf16.xpose.msra.mxu0 0
    %1123 = vmatprep.subr.bf16.mxu0 0
    %1124 = vmatpush1.bf16.xpose.msra.mxu0 0
    %1125 = vmatprep.subr.bf16.mxu0 0
    %1126 = vmatpush1.bf16.xpose.msra.mxu0 0
    %1127 = vmatprep.mubr.bf16.mxu0 0
    %1128 = vmatmul.mubr.bf16.gmra.mrb[0].mxu0 %v1084
    %v1129 = vpop.f32.mrb[0].mxu0
    %v1130 = vadd.f32 0.0, %v1129
    %v1131 = vpop.f32.mrb[0].mxu0
    %v1132 = vpop.f32.mrb[0].mxu0
    %v1133 = vadd.f32 0.0, %v1132
    %v1134 = vpop.f32.mrb[0].mxu0
    %1135 = vmatprep.mubr.bf16.mxu0 0
    %1136 = vmatmul.mubr.bf16.gmra.mrb[0].mxu0 %v1087
    %v1137 = vpop.f32.mrb[0].mxu0
    %v1138 = vadd.f32 0.0, %v1137
    %v1139 = vpop.f32.mrb[0].mxu0
    %v1140 = vpop.f32.mrb[0].mxu0
    %v1141 = vadd.f32 0.0, %v1140
    %v1142 = vpop.f32.mrb[0].mxu0
    %1143 = vdwg.mxu0
    %1144 = vrot.lane.b32.xlu0 %v342, 96
    %v1145 = vpop.permute.xlu0 %1144
    %1146 = vrot.lane.b32.xlu0 %v344, 96
    %v1147 = vpop.permute.xlu0 %1146
    %1148 = vrot.lane.b32.xlu0 %v342, 32
    %v1149 = vpop.permute.xlu0 %1148
    %1150 = vrot.lane.b32.xlu0 %v344, 32
    %v1151 = vpop.permute.xlu0 %1150
    %v1153 = vsel %vm363, %v1145, 0
    %v1156 = vsel %vm363, %v1147, 0
    %v1159 = vsel %vm363, %v1149, 0
    %v1162 = vsel %vm363, %v1151, 0
    %1164 = vmatprep.subr.bf16.mxu0 0
    %1165 = vmatpush1.bf16.xpose.msra.mxu0 %v1159
    %1166 = vmatprep.subr.bf16.mxu0 0
    %1167 = vmatpush1.bf16.xpose.msra.mxu0 %v1162
    %1168 = vmatprep.subr.bf16.mxu0 0
    %1169 = vmatpush1.bf16.xpose.msra.mxu0 0
    %1170 = vmatprep.subr.bf16.mxu0 0
    %1171 = vmatpush1.bf16.xpose.msra.mxu0 0
    %1172 = vmatprep.subr.bf16.mxu0 0
    %1173 = vmatpush1.bf16.xpose.msra.mxu0 0
    %1174 = vmatprep.subr.bf16.mxu0 0
    %1175 = vmatpush1.bf16.xpose.msra.mxu0 0
    %1176 = vmatprep.subr.bf16.mxu0 0
    %1177 = vmatpush1.bf16.xpose.msra.mxu0 0
    %1178 = vmatprep.subr.bf16.mxu0 0
    %1179 = vmatpush1.bf16.xpose.msra.mxu0 0
    %1180 = vmatprep.subr.bf16.mxu0 0
    %1181 = vmatpush1.bf16.xpose.msra.mxu0 0
    %1182 = vmatprep.subr.bf16.mxu0 0
    %1183 = vmatpush1.bf16.xpose.msra.mxu0 0
    %1184 = vmatprep.subr.bf16.mxu0 0
    %1185 = vmatpush1.bf16.xpose.msra.mxu0 0
    %1186 = vmatprep.subr.bf16.mxu0 0
    %1187 = vmatpush1.bf16.xpose.msra.mxu0 0
    %1188 = vmatprep.subr.bf16.mxu0 0
    %1189 = vmatpush1.bf16.xpose.msra.mxu0 0
    %1190 = vmatprep.subr.bf16.mxu0 0
    %1191 = vmatpush1.bf16.xpose.msra.mxu0 0
    %1192 = vmatprep.subr.bf16.mxu0 0
    %1193 = vmatpush1.bf16.xpose.msra.mxu0 0
    %1194 = vmatprep.subr.bf16.mxu0 0
    %1195 = vmatpush1.bf16.xpose.msra.mxu0 0
    %1196 = vmatprep.mubr.bf16.mxu0 0
    %1197 = vmatmul.mubr.bf16.gmra.mrb[0].mxu0 %v1153
    %v1198 = vpop.f32.mrb[0].mxu0
    %v1199 = vadd.f32 0.0, %v1198
    %v1200 = vpop.f32.mrb[0].mxu0
    %v1201 = vpop.f32.mrb[0].mxu0
    %v1202 = vadd.f32 0.0, %v1201
    %v1203 = vpop.f32.mrb[0].mxu0
    %1204 = vmatprep.mubr.bf16.mxu0 0
    %1205 = vmatmul.mubr.bf16.gmra.mrb[0].mxu0 %v1156
    %v1206 = vpop.f32.mrb[0].mxu0
    %v1207 = vadd.f32 0.0, %v1206
    %v1208 = vpop.f32.mrb[0].mxu0
    %v1209 = vpop.f32.mrb[0].mxu0
    %v1210 = vadd.f32 0.0, %v1209
    %v1211 = vpop.f32.mrb[0].mxu0
    %1212 = vdwg.mxu0
    %v1213 = vsel %vm496, %v1130, -1e+30
    %v1214 = vsel %vm497, %v1133, -1e+30
    %v1215 = vsel %vm498, %v1138, -1e+30
    %v1216 = vsel %vm499, %v1141, -1e+30
    %v1217 = vsel %vm496, %v1199, -1e+30
    %v1218 = vsel %vm497, %v1202, -1e+30
    %v1219 = vsel %vm498, %v1207, -1e+30
    %v1220 = vsel %vm499, %v1210, -1e+30
    %v1221 = vsel %vm508, %v1213, -inf
    %1222 = vmax.xlane.f32.xlu0 %v1221
    %v1223 = vpop.xlane.xlu0 %1222
    %v1224 = vsel %vm508, %v1214, -inf
    %1225 = vmax.xlane.f32.xlu0 %v1224
    %v1226 = vpop.xlane.xlu0 %1225
    %v1227 = vsel %vm508, %v1215, -inf
    %1228 = vmax.xlane.f32.xlu0 %v1227
    %v1229 = vpop.xlane.xlu0 %1228
    %v1230 = vsel %vm508, %v1216, -inf
    %1231 = vmax.xlane.f32.xlu0 %v1230
    %v1232 = vpop.xlane.xlu0 %1231
    %v1233 = vsel %vm508, %v1217, -inf
    %1234 = vmax.xlane.f32.xlu0 %v1233
    %v1235 = vpop.xlane.xlu0 %1234
    %v1236 = vsel %vm508, %v1218, -inf
    %1237 = vmax.xlane.f32.xlu0 %v1236
    %v1238 = vpop.xlane.xlu0 %1237
    %v1239 = vsel %vm508, %v1219, -inf
    %1240 = vmax.xlane.f32.xlu0 %v1239
    %v1241 = vpop.xlane.xlu0 %1240
    %v1242 = vsel %vm508, %v1220, -inf
    %1243 = vmax.xlane.f32.xlu0 %v1242
    %v1244 = vpop.xlane.xlu0 %1243
    %v1245 = vsub.f32 %v1213, %v1223
    %v1246 = vsub.f32 %v1214, %v1226
    %v1247 = vsub.f32 %v1215, %v1229
    %v1248 = vsub.f32 %v1216, %v1232
    %v1249 = vsub.f32 %v1217, %v1235
    %v1250 = vsub.f32 %v1218, %v1238
    %v1251 = vsub.f32 %v1219, %v1241
    %v1252 = vsub.f32 %v1220, %v1244
    %v1253 = vmul.f32 %v1245, 1.442695
    %v1254 = vpow.pop %v1253
    %v1255 = vmul.f32 %v1246, 1.442695
    %v1256 = vpow.pop %v1255
    %v1257 = vmul.f32 %v1247, 1.442695
    %v1258 = vpow.pop %v1257
    %v1259 = vmul.f32 %v1248, 1.442695
    %v1260 = vpow.pop %v1259
    %v1261 = vmul.f32 %v1249, 1.442695
    %v1262 = vpow.pop %v1261
    %v1263 = vmul.f32 %v1250, 1.442695
    %v1264 = vpow.pop %v1263
    %v1265 = vmul.f32 %v1251, 1.442695
    %v1266 = vpow.pop %v1265
    %v1267 = vmul.f32 %v1252, 1.442695
    %v1268 = vpow.pop %v1267
    %v1269 = vsel %vm508, %v1254, 0.0
    %1270 = vadd.xlane.f32.xlu0 %v1269
    %v1271 = vpop.xlane.xlu0 %1270
    %v1272 = vsel %vm508, %v1256, 0.0
    %1273 = vadd.xlane.f32.xlu0 %v1272
    %v1274 = vpop.xlane.xlu0 %1273
    %v1275 = vsel %vm508, %v1258, 0.0
    %1276 = vadd.xlane.f32.xlu0 %v1275
    %v1277 = vpop.xlane.xlu0 %1276
    %v1278 = vsel %vm508, %v1260, 0.0
    %1279 = vadd.xlane.f32.xlu0 %v1278
    %v1280 = vpop.xlane.xlu0 %1279
    %v1281 = vsel %vm508, %v1262, 0.0
    %1282 = vadd.xlane.f32.xlu0 %v1281
    %v1283 = vpop.xlane.xlu0 %1282
    %v1284 = vsel %vm508, %v1264, 0.0
    %1285 = vadd.xlane.f32.xlu0 %v1284
    %v1286 = vpop.xlane.xlu0 %1285
    %v1287 = vsel %vm508, %v1266, 0.0
    %1288 = vadd.xlane.f32.xlu0 %v1287
    %v1289 = vpop.xlane.xlu0 %1288
    %v1290 = vsel %vm508, %v1268, 0.0
    %1291 = vadd.xlane.f32.xlu0 %v1290
    %v1292 = vpop.xlane.xlu0 %1291
    %v1293 = vpack.c.bf16 %v1256, %v1254
    %v1294 = vpack.c.bf16 %v1260, %v1258
    %v1295 = vpack.c.bf16 %v1264, %v1262
    %v1296 = vpack.c.bf16 %v1268, %v1266
    %1297 = vrot.lane.b32.xlu0 %v339, 96
    %v1298 = vpop.permute.xlu0 %1297
    %1299 = vrot.lane.b32.xlu0 %v341, 96
    %v1300 = vpop.permute.xlu0 %1299
    %v1304 = vsel %vm508, %v1293, 0
    %v1307 = vsel %vm508, %v1294, 0
    %1309 = vmatprep.subr.bf16.mxu0 0
    %1310 = vmatpush1.bf16.msra.mxu0 %v1298
    %1311 = vmatprep.subr.bf16.mxu0 0
    %1312 = vmatpush1.bf16.msra.mxu0 %v1300
    %1313 = vmatprep.subr.bf16.mxu0 0
    %1314 = vmatpush1.bf16.msra.mxu0 0
    %1315 = vmatprep.subr.bf16.mxu0 0
    %1316 = vmatpush1.bf16.msra.mxu0 0
    %1317 = vmatprep.subr.bf16.mxu0 0
    %1318 = vmatpush1.bf16.msra.mxu0 0
    %1319 = vmatprep.subr.bf16.mxu0 0
    %1320 = vmatpush1.bf16.msra.mxu0 0
    %1321 = vmatprep.subr.bf16.mxu0 0
    %1322 = vmatpush1.bf16.msra.mxu0 0
    %1323 = vmatprep.subr.bf16.mxu0 0
    %1324 = vmatpush1.bf16.msra.mxu0 0
    %1325 = vmatprep.subr.bf16.mxu0 0
    %1326 = vmatpush1.bf16.msra.mxu0 0
    %1327 = vmatprep.subr.bf16.mxu0 0
    %1328 = vmatpush1.bf16.msra.mxu0 0
    %1329 = vmatprep.subr.bf16.mxu0 0
    %1330 = vmatpush1.bf16.msra.mxu0 0
    %1331 = vmatprep.subr.bf16.mxu0 0
    %1332 = vmatpush1.bf16.msra.mxu0 0
    %1333 = vmatprep.subr.bf16.mxu0 0
    %1334 = vmatpush1.bf16.msra.mxu0 0
    %1335 = vmatprep.subr.bf16.mxu0 0
    %1336 = vmatpush1.bf16.msra.mxu0 0
    %1337 = vmatprep.subr.bf16.mxu0 0
    %1338 = vmatpush1.bf16.msra.mxu0 0
    %1339 = vmatprep.subr.bf16.mxu0 0
    %1340 = vmatpush1.bf16.msra.mxu0 0
    %1341 = vmatprep.mubr.bf16.mxu0 0
    %1342 = vmatmul.mubr.bf16.gmra.mrb[0].mxu0 %v1304
    %v1343 = vpop.f32.mrb[0].mxu0
    %v1344 = vadd.f32 0.0, %v1343
    %v1345 = vpop.f32.mrb[0].mxu0
    %v1346 = vpop.f32.mrb[0].mxu0
    %v1347 = vadd.f32 0.0, %v1346
    %v1348 = vpop.f32.mrb[0].mxu0
    %1349 = vmatprep.mubr.bf16.mxu0 0
    %1350 = vmatmul.mubr.bf16.gmra.mrb[0].mxu0 %v1307
    %v1351 = vpop.f32.mrb[0].mxu0
    %v1352 = vadd.f32 0.0, %v1351
    %v1353 = vpop.f32.mrb[0].mxu0
    %v1354 = vpop.f32.mrb[0].mxu0
    %v1355 = vadd.f32 0.0, %v1354
    %v1356 = vpop.f32.mrb[0].mxu0
    %1357 = vdwg.mxu0
    %1358 = vrot.lane.b32.xlu0 %v343, 96
    %v1359 = vpop.permute.xlu0 %1358
    %1360 = vrot.lane.b32.xlu0 %v345, 96
    %v1361 = vpop.permute.xlu0 %1360
    %v1365 = vsel %vm508, %v1295, 0
    %v1368 = vsel %vm508, %v1296, 0
    %1370 = vmatprep.subr.bf16.mxu0 0
    %1371 = vmatpush1.bf16.msra.mxu0 %v1359
    %1372 = vmatprep.subr.bf16.mxu0 0
    %1373 = vmatpush1.bf16.msra.mxu0 %v1361
    %1374 = vmatprep.subr.bf16.mxu0 0
    %1375 = vmatpush1.bf16.msra.mxu0 0
    %1376 = vmatprep.subr.bf16.mxu0 0
    %1377 = vmatpush1.bf16.msra.mxu0 0
    %1378 = vmatprep.subr.bf16.mxu0 0
    %1379 = vmatpush1.bf16.msra.mxu0 0
    %1380 = vmatprep.subr.bf16.mxu0 0
    %1381 = vmatpush1.bf16.msra.mxu0 0
    %1382 = vmatprep.subr.bf16.mxu0 0
    %1383 = vmatpush1.bf16.msra.mxu0 0
    %1384 = vmatprep.subr.bf16.mxu0 0
    %1385 = vmatpush1.bf16.msra.mxu0 0
    %1386 = vmatprep.subr.bf16.mxu0 0
    %1387 = vmatpush1.bf16.msra.mxu0 0
    %1388 = vmatprep.subr.bf16.mxu0 0
    %1389 = vmatpush1.bf16.msra.mxu0 0
    %1390 = vmatprep.subr.bf16.mxu0 0
    %1391 = vmatpush1.bf16.msra.mxu0 0
    %1392 = vmatprep.subr.bf16.mxu0 0
    %1393 = vmatpush1.bf16.msra.mxu0 0
    %1394 = vmatprep.subr.bf16.mxu0 0
    %1395 = vmatpush1.bf16.msra.mxu0 0
    %1396 = vmatprep.subr.bf16.mxu0 0
    %1397 = vmatpush1.bf16.msra.mxu0 0
    %1398 = vmatprep.subr.bf16.mxu0 0
    %1399 = vmatpush1.bf16.msra.mxu0 0
    %1400 = vmatprep.subr.bf16.mxu0 0
    %1401 = vmatpush1.bf16.msra.mxu0 0
    %1402 = vmatprep.mubr.bf16.mxu0 0
    %1403 = vmatmul.mubr.bf16.gmra.mrb[0].mxu0 %v1365
    %v1404 = vpop.f32.mrb[0].mxu0
    %v1405 = vadd.f32 0.0, %v1404
    %v1406 = vpop.f32.mrb[0].mxu0
    %v1407 = vpop.f32.mrb[0].mxu0
    %v1408 = vadd.f32 0.0, %v1407
    %v1409 = vpop.f32.mrb[0].mxu0
    %1410 = vmatprep.mubr.bf16.mxu0 0
    %1411 = vmatmul.mubr.bf16.gmra.mrb[0].mxu0 %v1368
    %v1412 = vpop.f32.mrb[0].mxu0
    %v1413 = vadd.f32 0.0, %v1412
    %v1414 = vpop.f32.mrb[0].mxu0
    %v1415 = vpop.f32.mrb[0].mxu0
    %v1416 = vadd.f32 0.0, %v1415
    %v1417 = vpop.f32.mrb[0].mxu0
    %1418 = vdwg.mxu0
    %v1419 = vrcp.pop %v1271
    %v1420 = vrcp.pop %v1274
    %v1421 = vrcp.pop %v1277
    %v1422 = vrcp.pop %v1280
    %v1423 = vrcp.pop %v1283
    %v1424 = vrcp.pop %v1286
    %v1425 = vrcp.pop %v1289
    %v1426 = vrcp.pop %v1292
    %v1427 = vmul.f32 %v1344, %v1419
    %v1428 = vmul.f32 %v1347, %v1420
    %v1429 = vmul.f32 %v1352, %v1421
    %v1430 = vmul.f32 %v1355, %v1422
    %v1431 = vmul.f32 %v1405, %v1423
    %v1432 = vmul.f32 %v1408, %v1424
    %v1433 = vmul.f32 %v1413, %v1425
    %v1434 = vmul.f32 %v1416, %v1426
    %1435 = vrot.lane.b32.xlu0 %v338, 80
    %v1436 = vpop.permute.xlu0 %1435
    %1437 = vrot.lane.b32.xlu0 %v340, 80
    %v1438 = vpop.permute.xlu0 %1437
    %1439 = vrot.lane.b32.xlu0 %v338, 16
    %v1440 = vpop.permute.xlu0 %1439
    %1441 = vrot.lane.b32.xlu0 %v340, 16
    %v1442 = vpop.permute.xlu0 %1441
    %v1444 = vsel %vm363, %v1436, 0
    %v1447 = vsel %vm363, %v1438, 0
    %v1450 = vsel %vm363, %v1440, 0
    %v1453 = vsel %vm363, %v1442, 0
    %1455 = vmatprep.subr.bf16.mxu0 0
    %1456 = vmatpush1.bf16.xpose.msra.mxu0 %v1450
    %1457 = vmatprep.subr.bf16.mxu0 0
    %1458 = vmatpush1.bf16.xpose.msra.mxu0 %v1453
    %1459 = vmatprep.subr.bf16.mxu0 0
    %1460 = vmatpush1.bf16.xpose.msra.mxu0 0
    %1461 = vmatprep.subr.bf16.mxu0 0
    %1462 = vmatpush1.bf16.xpose.msra.mxu0 0
    %1463 = vmatprep.subr.bf16.mxu0 0
    %1464 = vmatpush1.bf16.xpose.msra.mxu0 0
    %1465 = vmatprep.subr.bf16.mxu0 0
    %1466 = vmatpush1.bf16.xpose.msra.mxu0 0
    %1467 = vmatprep.subr.bf16.mxu0 0
    %1468 = vmatpush1.bf16.xpose.msra.mxu0 0
    %1469 = vmatprep.subr.bf16.mxu0 0
    %1470 = vmatpush1.bf16.xpose.msra.mxu0 0
    %1471 = vmatprep.subr.bf16.mxu0 0
    %1472 = vmatpush1.bf16.xpose.msra.mxu0 0
    %1473 = vmatprep.subr.bf16.mxu0 0
    %1474 = vmatpush1.bf16.xpose.msra.mxu0 0
    %1475 = vmatprep.subr.bf16.mxu0 0
    %1476 = vmatpush1.bf16.xpose.msra.mxu0 0
    %1477 = vmatprep.subr.bf16.mxu0 0
    %1478 = vmatpush1.bf16.xpose.msra.mxu0 0
    %1479 = vmatprep.subr.bf16.mxu0 0
    %1480 = vmatpush1.bf16.xpose.msra.mxu0 0
    %1481 = vmatprep.subr.bf16.mxu0 0
    %1482 = vmatpush1.bf16.xpose.msra.mxu0 0
    %1483 = vmatprep.subr.bf16.mxu0 0
    %1484 = vmatpush1.bf16.xpose.msra.mxu0 0
    %1485 = vmatprep.subr.bf16.mxu0 0
    %1486 = vmatpush1.bf16.xpose.msra.mxu0 0
    %1487 = vmatprep.mubr.bf16.mxu0 0
    %1488 = vmatmul.mubr.bf16.gmra.mrb[0].mxu0 %v1444
    %v1489 = vpop.f32.mrb[0].mxu0
    %v1490 = vadd.f32 0.0, %v1489
    %v1491 = vpop.f32.mrb[0].mxu0
    %v1492 = vpop.f32.mrb[0].mxu0
    %v1493 = vadd.f32 0.0, %v1492
    %v1494 = vpop.f32.mrb[0].mxu0
    %1495 = vmatprep.mubr.bf16.mxu0 0
    %1496 = vmatmul.mubr.bf16.gmra.mrb[0].mxu0 %v1447
    %v1497 = vpop.f32.mrb[0].mxu0
    %v1498 = vadd.f32 0.0, %v1497
    %v1499 = vpop.f32.mrb[0].mxu0
    %v1500 = vpop.f32.mrb[0].mxu0
    %v1501 = vadd.f32 0.0, %v1500
    %v1502 = vpop.f32.mrb[0].mxu0
    %1503 = vdwg.mxu0
    %1504 = vrot.lane.b32.xlu0 %v342, 80
    %v1505 = vpop.permute.xlu0 %1504
    %1506 = vrot.lane.b32.xlu0 %v344, 80
    %v1507 = vpop.permute.xlu0 %1506
    %1508 = vrot.lane.b32.xlu0 %v342, 16
    %v1509 = vpop.permute.xlu0 %1508
    %1510 = vrot.lane.b32.xlu0 %v344, 16
    %v1511 = vpop.permute.xlu0 %1510
    %v1513 = vsel %vm363, %v1505, 0
    %v1516 = vsel %vm363, %v1507, 0
    %v1519 = vsel %vm363, %v1509, 0
    %v1522 = vsel %vm363, %v1511, 0
    %1524 = vmatprep.subr.bf16.mxu0 0
    %1525 = vmatpush1.bf16.xpose.msra.mxu0 %v1519
    %1526 = vmatprep.subr.bf16.mxu0 0
    %1527 = vmatpush1.bf16.xpose.msra.mxu0 %v1522
    %1528 = vmatprep.subr.bf16.mxu0 0
    %1529 = vmatpush1.bf16.xpose.msra.mxu0 0
    %1530 = vmatprep.subr.bf16.mxu0 0
    %1531 = vmatpush1.bf16.xpose.msra.mxu0 0
    %1532 = vmatprep.subr.bf16.mxu0 0
    %1533 = vmatpush1.bf16.xpose.msra.mxu0 0
    %1534 = vmatprep.subr.bf16.mxu0 0
    %1535 = vmatpush1.bf16.xpose.msra.mxu0 0
    %1536 = vmatprep.subr.bf16.mxu0 0
    %1537 = vmatpush1.bf16.xpose.msra.mxu0 0
    %1538 = vmatprep.subr.bf16.mxu0 0
    %1539 = vmatpush1.bf16.xpose.msra.mxu0 0
    %1540 = vmatprep.subr.bf16.mxu0 0
    %1541 = vmatpush1.bf16.xpose.msra.mxu0 0
    %1542 = vmatprep.subr.bf16.mxu0 0
    %1543 = vmatpush1.bf16.xpose.msra.mxu0 0
    %1544 = vmatprep.subr.bf16.mxu0 0
    %1545 = vmatpush1.bf16.xpose.msra.mxu0 0
    %1546 = vmatprep.subr.bf16.mxu0 0
    %1547 = vmatpush1.bf16.xpose.msra.mxu0 0
    %1548 = vmatprep.subr.bf16.mxu0 0
    %1549 = vmatpush1.bf16.xpose.msra.mxu0 0
    %1550 = vmatprep.subr.bf16.mxu0 0
    %1551 = vmatpush1.bf16.xpose.msra.mxu0 0
    %1552 = vmatprep.subr.bf16.mxu0 0
    %1553 = vmatpush1.bf16.xpose.msra.mxu0 0
    %1554 = vmatprep.subr.bf16.mxu0 0
    %1555 = vmatpush1.bf16.xpose.msra.mxu0 0
    %1556 = vmatprep.mubr.bf16.mxu0 0
    %1557 = vmatmul.mubr.bf16.gmra.mrb[0].mxu0 %v1513
    %v1558 = vpop.f32.mrb[0].mxu0
    %v1559 = vadd.f32 0.0, %v1558
    %v1560 = vpop.f32.mrb[0].mxu0
    %v1561 = vpop.f32.mrb[0].mxu0
    %v1562 = vadd.f32 0.0, %v1561
    %v1563 = vpop.f32.mrb[0].mxu0
    %1564 = vmatprep.mubr.bf16.mxu0 0
    %1565 = vmatmul.mubr.bf16.gmra.mrb[0].mxu0 %v1516
    %v1566 = vpop.f32.mrb[0].mxu0
    %v1567 = vadd.f32 0.0, %v1566
    %v1568 = vpop.f32.mrb[0].mxu0
    %v1569 = vpop.f32.mrb[0].mxu0
    %v1570 = vadd.f32 0.0, %v1569
    %v1571 = vpop.f32.mrb[0].mxu0
    %1572 = vdwg.mxu0
    %v1573 = vsel %vm496, %v1490, -1e+30
    %v1574 = vsel %vm497, %v1493, -1e+30
    %v1575 = vsel %vm498, %v1498, -1e+30
    %v1576 = vsel %vm499, %v1501, -1e+30
    %v1577 = vsel %vm496, %v1559, -1e+30
    %v1578 = vsel %vm497, %v1562, -1e+30
    %v1579 = vsel %vm498, %v1567, -1e+30
    %v1580 = vsel %vm499, %v1570, -1e+30
    %v1581 = vsel %vm508, %v1573, -inf
    %1582 = vmax.xlane.f32.xlu0 %v1581
    %v1583 = vpop.xlane.xlu0 %1582
    %v1584 = vsel %vm508, %v1574, -inf
    %1585 = vmax.xlane.f32.xlu0 %v1584
    %v1586 = vpop.xlane.xlu0 %1585
    %v1587 = vsel %vm508, %v1575, -inf
    %1588 = vmax.xlane.f32.xlu0 %v1587
    %v1589 = vpop.xlane.xlu0 %1588
    %v1590 = vsel %vm508, %v1576, -inf
    %1591 = vmax.xlane.f32.xlu0 %v1590
    %v1592 = vpop.xlane.xlu0 %1591
    %v1593 = vsel %vm508, %v1577, -inf
    %1594 = vmax.xlane.f32.xlu0 %v1593
    %v1595 = vpop.xlane.xlu0 %1594
    %v1596 = vsel %vm508, %v1578, -inf
    %1597 = vmax.xlane.f32.xlu0 %v1596
    %v1598 = vpop.xlane.xlu0 %1597
    %v1599 = vsel %vm508, %v1579, -inf
    %1600 = vmax.xlane.f32.xlu0 %v1599
    %v1601 = vpop.xlane.xlu0 %1600
    %v1602 = vsel %vm508, %v1580, -inf
    %1603 = vmax.xlane.f32.xlu0 %v1602
    %v1604 = vpop.xlane.xlu0 %1603
    %v1605 = vsub.f32 %v1573, %v1583
    %v1606 = vsub.f32 %v1574, %v1586
    %v1607 = vsub.f32 %v1575, %v1589
    %v1608 = vsub.f32 %v1576, %v1592
    %v1609 = vsub.f32 %v1577, %v1595
    %v1610 = vsub.f32 %v1578, %v1598
    %v1611 = vsub.f32 %v1579, %v1601
    %v1612 = vsub.f32 %v1580, %v1604
    %v1613 = vmul.f32 %v1605, 1.442695
    %v1614 = vpow.pop %v1613
    %v1615 = vmul.f32 %v1606, 1.442695
    %v1616 = vpow.pop %v1615
    %v1617 = vmul.f32 %v1607, 1.442695
    %v1618 = vpow.pop %v1617
    %v1619 = vmul.f32 %v1608, 1.442695
    %v1620 = vpow.pop %v1619
    %v1621 = vmul.f32 %v1609, 1.442695
    %v1622 = vpow.pop %v1621
    %v1623 = vmul.f32 %v1610, 1.442695
    %v1624 = vpow.pop %v1623
    %v1625 = vmul.f32 %v1611, 1.442695
    %v1626 = vpow.pop %v1625
    %v1627 = vmul.f32 %v1612, 1.442695
    %v1628 = vpow.pop %v1627
    %v1629 = vsel %vm508, %v1614, 0.0
    %1630 = vadd.xlane.f32.xlu0 %v1629
    %v1631 = vpop.xlane.xlu0 %1630
    %v1632 = vsel %vm508, %v1616, 0.0
    %1633 = vadd.xlane.f32.xlu0 %v1632
    %v1634 = vpop.xlane.xlu0 %1633
    %v1635 = vsel %vm508, %v1618, 0.0
    %1636 = vadd.xlane.f32.xlu0 %v1635
    %v1637 = vpop.xlane.xlu0 %1636
    %v1638 = vsel %vm508, %v1620, 0.0
    %1639 = vadd.xlane.f32.xlu0 %v1638
    %v1640 = vpop.xlane.xlu0 %1639
    %v1641 = vsel %vm508, %v1622, 0.0
    %1642 = vadd.xlane.f32.xlu0 %v1641
    %v1643 = vpop.xlane.xlu0 %1642
    %v1644 = vsel %vm508, %v1624, 0.0
    %1645 = vadd.xlane.f32.xlu0 %v1644
    %v1646 = vpop.xlane.xlu0 %1645
    %v1647 = vsel %vm508, %v1626, 0.0
    %1648 = vadd.xlane.f32.xlu0 %v1647
    %v1649 = vpop.xlane.xlu0 %1648
    %v1650 = vsel %vm508, %v1628, 0.0
    %1651 = vadd.xlane.f32.xlu0 %v1650
    %v1652 = vpop.xlane.xlu0 %1651
    %v1653 = vpack.c.bf16 %v1616, %v1614
    %v1654 = vpack.c.bf16 %v1620, %v1618
    %v1655 = vpack.c.bf16 %v1624, %v1622
    %v1656 = vpack.c.bf16 %v1628, %v1626
    %1657 = vrot.lane.b32.xlu0 %v339, 80
    %v1658 = vpop.permute.xlu0 %1657
    %1659 = vrot.lane.b32.xlu0 %v341, 80
    %v1660 = vpop.permute.xlu0 %1659
    %v1664 = vsel %vm508, %v1653, 0
    %v1667 = vsel %vm508, %v1654, 0
    %1669 = vmatprep.subr.bf16.mxu0 0
    %1670 = vmatpush1.bf16.msra.mxu0 %v1658
    %1671 = vmatprep.subr.bf16.mxu0 0
    %1672 = vmatpush1.bf16.msra.mxu0 %v1660
    %1673 = vmatprep.subr.bf16.mxu0 0
    %1674 = vmatpush1.bf16.msra.mxu0 0
    %1675 = vmatprep.subr.bf16.mxu0 0
    %1676 = vmatpush1.bf16.msra.mxu0 0
    %1677 = vmatprep.subr.bf16.mxu0 0
    %1678 = vmatpush1.bf16.msra.mxu0 0
    %1679 = vmatprep.subr.bf16.mxu0 0
    %1680 = vmatpush1.bf16.msra.mxu0 0
    %1681 = vmatprep.subr.bf16.mxu0 0
    %1682 = vmatpush1.bf16.msra.mxu0 0
    %1683 = vmatprep.subr.bf16.mxu0 0
    %1684 = vmatpush1.bf16.msra.mxu0 0
    %1685 = vmatprep.subr.bf16.mxu0 0
    %1686 = vmatpush1.bf16.msra.mxu0 0
    %1687 = vmatprep.subr.bf16.mxu0 0
    %1688 = vmatpush1.bf16.msra.mxu0 0
    %1689 = vmatprep.subr.bf16.mxu0 0
    %1690 = vmatpush1.bf16.msra.mxu0 0
    %1691 = vmatprep.subr.bf16.mxu0 0
    %1692 = vmatpush1.bf16.msra.mxu0 0
    %1693 = vmatprep.subr.bf16.mxu0 0
    %1694 = vmatpush1.bf16.msra.mxu0 0
    %1695 = vmatprep.subr.bf16.mxu0 0
    %1696 = vmatpush1.bf16.msra.mxu0 0
    %1697 = vmatprep.subr.bf16.mxu0 0
    %1698 = vmatpush1.bf16.msra.mxu0 0
    %1699 = vmatprep.subr.bf16.mxu0 0
    %1700 = vmatpush1.bf16.msra.mxu0 0
    %1701 = vmatprep.mubr.bf16.mxu0 0
    %1702 = vmatmul.mubr.bf16.gmra.mrb[0].mxu0 %v1664
    %v1703 = vpop.f32.mrb[0].mxu0
    %v1704 = vadd.f32 0.0, %v1703
    %v1705 = vpop.f32.mrb[0].mxu0
    %v1706 = vpop.f32.mrb[0].mxu0
    %v1707 = vadd.f32 0.0, %v1706
    %v1708 = vpop.f32.mrb[0].mxu0
    %1709 = vmatprep.mubr.bf16.mxu0 0
    %1710 = vmatmul.mubr.bf16.gmra.mrb[0].mxu0 %v1667
    %v1711 = vpop.f32.mrb[0].mxu0
    %v1712 = vadd.f32 0.0, %v1711
    %v1713 = vpop.f32.mrb[0].mxu0
    %v1714 = vpop.f32.mrb[0].mxu0
    %v1715 = vadd.f32 0.0, %v1714
    %v1716 = vpop.f32.mrb[0].mxu0
    %1717 = vdwg.mxu0
    %1718 = vrot.lane.b32.xlu0 %v343, 80
    %v1719 = vpop.permute.xlu0 %1718
    %1720 = vrot.lane.b32.xlu0 %v345, 80
    %v1721 = vpop.permute.xlu0 %1720
    %v1725 = vsel %vm508, %v1655, 0
    %v1728 = vsel %vm508, %v1656, 0
    %1730 = vmatprep.subr.bf16.mxu0 0
    %1731 = vmatpush1.bf16.msra.mxu0 %v1719
    %1732 = vmatprep.subr.bf16.mxu0 0
    %1733 = vmatpush1.bf16.msra.mxu0 %v1721
    %1734 = vmatprep.subr.bf16.mxu0 0
    %1735 = vmatpush1.bf16.msra.mxu0 0
    %1736 = vmatprep.subr.bf16.mxu0 0
    %1737 = vmatpush1.bf16.msra.mxu0 0
    %1738 = vmatprep.subr.bf16.mxu0 0
    %1739 = vmatpush1.bf16.msra.mxu0 0
    %1740 = vmatprep.subr.bf16.mxu0 0
    %1741 = vmatpush1.bf16.msra.mxu0 0
    %1742 = vmatprep.subr.bf16.mxu0 0
    %1743 = vmatpush1.bf16.msra.mxu0 0
    %1744 = vmatprep.subr.bf16.mxu0 0
    %1745 = vmatpush1.bf16.msra.mxu0 0
    %1746 = vmatprep.subr.bf16.mxu0 0
    %1747 = vmatpush1.bf16.msra.mxu0 0
    %1748 = vmatprep.subr.bf16.mxu0 0
    %1749 = vmatpush1.bf16.msra.mxu0 0
    %1750 = vmatprep.subr.bf16.mxu0 0
    %1751 = vmatpush1.bf16.msra.mxu0 0
    %1752 = vmatprep.subr.bf16.mxu0 0
    %1753 = vmatpush1.bf16.msra.mxu0 0
    %1754 = vmatprep.subr.bf16.mxu0 0
    %1755 = vmatpush1.bf16.msra.mxu0 0
    %1756 = vmatprep.subr.bf16.mxu0 0
    %1757 = vmatpush1.bf16.msra.mxu0 0
    %1758 = vmatprep.subr.bf16.mxu0 0
    %1759 = vmatpush1.bf16.msra.mxu0 0
    %1760 = vmatprep.subr.bf16.mxu0 0
    %1761 = vmatpush1.bf16.msra.mxu0 0
    %1762 = vmatprep.mubr.bf16.mxu0 0
    %1763 = vmatmul.mubr.bf16.gmra.mrb[0].mxu0 %v1725
    %v1764 = vpop.f32.mrb[0].mxu0
    %v1765 = vadd.f32 0.0, %v1764
    %v1766 = vpop.f32.mrb[0].mxu0
    %v1767 = vpop.f32.mrb[0].mxu0
    %v1768 = vadd.f32 0.0, %v1767
    %v1769 = vpop.f32.mrb[0].mxu0
    %1770 = vmatprep.mubr.bf16.mxu0 0
    %1771 = vmatmul.mubr.bf16.gmra.mrb[0].mxu0 %v1728
    %v1772 = vpop.f32.mrb[0].mxu0
    %v1773 = vadd.f32 0.0, %v1772
    %v1774 = vpop.f32.mrb[0].mxu0
    %v1775 = vpop.f32.mrb[0].mxu0
    %v1776 = vadd.f32 0.0, %v1775
    %v1777 = vpop.f32.mrb[0].mxu0
    %1778 = vdwg.mxu0
    %v1779 = vrcp.pop %v1631
    %v1780 = vrcp.pop %v1634
    %v1781 = vrcp.pop %v1637
    %v1782 = vrcp.pop %v1640
    %v1783 = vrcp.pop %v1643
    %v1784 = vrcp.pop %v1646
    %v1785 = vrcp.pop %v1649
    %v1786 = vrcp.pop %v1652
    %v1787 = vmul.f32 %v1704, %v1779
    %v1788 = vmul.f32 %v1707, %v1780
    %v1789 = vmul.f32 %v1712, %v1781
    %v1790 = vmul.f32 %v1715, %v1782
    %v1791 = vmul.f32 %v1765, %v1783
    %v1792 = vmul.f32 %v1768, %v1784
    %v1793 = vmul.f32 %v1773, %v1785
    %v1794 = vmul.f32 %v1776, %v1786
    %1803 = vrot.lane.b32.xlu0 %v1067, 16
    %v1804 = vpop.permute.xlu0 %1803
    %1805 = vrot.lane.b32.xlu0 %v1068, 16
    %v1806 = vpop.permute.xlu0 %1805
    %1807 = vrot.lane.b32.xlu0 %v1069, 16
    %v1808 = vpop.permute.xlu0 %1807
    %1809 = vrot.lane.b32.xlu0 %v1070, 16
    %v1810 = vpop.permute.xlu0 %1809
    %1811 = vrot.lane.b32.xlu0 %v1071, 16
    %v1812 = vpop.permute.xlu0 %1811
    %1813 = vrot.lane.b32.xlu0 %v1072, 16
    %v1814 = vpop.permute.xlu0 %1813
    %1815 = vrot.lane.b32.xlu0 %v1073, 16
    %v1816 = vpop.permute.xlu0 %1815
    %1817 = vrot.lane.b32.xlu0 %v1074, 16
    %v1818 = vpop.permute.xlu0 %1817
    %1835 = vrot.lane.b32.xlu0 %v1427, 32
    %v1836 = vpop.permute.xlu0 %1835
    %1837 = vrot.lane.b32.xlu0 %v1428, 32
    %v1838 = vpop.permute.xlu0 %1837
    %1839 = vrot.lane.b32.xlu0 %v1429, 32
    %v1840 = vpop.permute.xlu0 %1839
    %1841 = vrot.lane.b32.xlu0 %v1430, 32
    %v1842 = vpop.permute.xlu0 %1841
    %1843 = vrot.lane.b32.xlu0 %v1431, 32
    %v1844 = vpop.permute.xlu0 %1843
    %1845 = vrot.lane.b32.xlu0 %v1432, 32
    %v1846 = vpop.permute.xlu0 %1845
    %1847 = vrot.lane.b32.xlu0 %v1433, 32
    %v1848 = vpop.permute.xlu0 %1847
    %1849 = vrot.lane.b32.xlu0 %v1434, 32
    %v1850 = vpop.permute.xlu0 %1849
    %1867 = vrot.lane.b32.xlu0 %v1787, 48
    %v1868 = vpop.permute.xlu0 %1867
    %1869 = vrot.lane.b32.xlu0 %v1788, 48
    %v1870 = vpop.permute.xlu0 %1869
    %1871 = vrot.lane.b32.xlu0 %v1789, 48
    %v1872 = vpop.permute.xlu0 %1871
    %1873 = vrot.lane.b32.xlu0 %v1790, 48
    %v1874 = vpop.permute.xlu0 %1873
    %1875 = vrot.lane.b32.xlu0 %v1791, 48
    %v1876 = vpop.permute.xlu0 %1875
    %1877 = vrot.lane.b32.xlu0 %v1792, 48
    %v1878 = vpop.permute.xlu0 %1877
    %1879 = vrot.lane.b32.xlu0 %v1793, 48
    %v1880 = vpop.permute.xlu0 %1879
    %1881 = vrot.lane.b32.xlu0 %v1794, 48
    %v1882 = vpop.permute.xlu0 %1881
    %v1891 = vsel %vm363, %v703, %v1804
    %v1892 = vsel %vm363, %v704, %v1806
    %v1893 = vsel %vm363, %v705, %v1808
    %v1894 = vsel %vm363, %v706, %v1810
    %v1895 = vsel %vm363, %v707, %v1812
    %v1896 = vsel %vm363, %v708, %v1814
    %v1897 = vsel %vm363, %v709, %v1816
    %v1898 = vsel %vm363, %v710, %v1818
    %v1899 = vsel %vm508, %v1891, %v1836
    %v1900 = vsel %vm508, %v1892, %v1838
    %v1901 = vsel %vm508, %v1893, %v1840
    %v1902 = vsel %vm508, %v1894, %v1842
    %v1903 = vsel %vm508, %v1895, %v1844
    %v1904 = vsel %vm508, %v1896, %v1846
    %v1905 = vsel %vm508, %v1897, %v1848
    %v1906 = vsel %vm508, %v1898, %v1850
    %vm1907 = vcmask 392192
    %v1908 = vsel %vm1907, %v1899, %v1868
    %v1909 = vsel %vm1907, %v1900, %v1870
    %v1910 = vsel %vm1907, %v1901, %v1872
    %v1911 = vsel %vm1907, %v1902, %v1874
    %v1912 = vsel %vm1907, %v1903, %v1876
    %v1913 = vsel %vm1907, %v1904, %v1878
    %v1914 = vsel %vm1907, %v1905, %v1880
    %v1915 = vsel %vm1907, %v1906, %v1882
    %v1916 = vpack.c.bf16 %v1909, %v1908
    %v1917 = vpack.c.bf16 %v1911, %v1910
    %v1918 = vpack.c.bf16 %v1913, %v1912
    %v1919 = vpack.c.bf16 %v1915, %v1914
    %v1920 = vld [vmem:[#allocation2] sm:$0xf]
    %v1921 = vld [vmem:[#allocation2 + $0x4] sm:$0xf]
    %v1922 = vld [vmem:[#allocation2 + $0x8] sm:$0xf]
    %v1923 = vld [vmem:[#allocation2 + $0xc] sm:$0xf]
    %v1924 = vld [vmem:[#allocation2 + $0x10] sm:$0xf]
    %v1925 = vld [vmem:[#allocation2 + $0x14] sm:$0xf]
    %v1926 = vld [vmem:[#allocation2 + $0x18] sm:$0xf]
    %v1927 = vld [vmem:[#allocation2 + $0x1c] sm:$0xf]
    %v1928 = vld [vmem:[%s5] sm:$0x1]
    %v1930 = vlaneseq
    %v1931 = vshrl.u32 %v1930, 7
    %v1932 = vsub.s32 0, %v1931
    %v1933 = vrot.slane %v1928, %v1932
    %v1943 = vunpack.c.l.b16 %v1920
    %v1944 = vunpack.c.l.b16 %v1921
    %v1945 = vunpack.c.l.b16 %v1922
    %v1946 = vunpack.c.l.b16 %v1923
    %v1947 = vunpack.c.l.b16 %v1924
    %v1948 = vunpack.c.l.b16 %v1925
    %v1949 = vunpack.c.l.b16 %v1926
    %v1950 = vunpack.c.l.b16 %v1927
    %v1951 = vpack.c.b16 %v1944, %v1943
    %v1952 = vpack.c.b16 %v1946, %v1945
    %v1953 = vpack.c.b16 %v1948, %v1947
    %v1954 = vpack.c.b16 %v1950, %v1949
    %v1960 = vsel %vm67, %v1916, 0
    %v1963 = vsel %vm67, %v1917, 0
    %v1966 = vsel %vm67, %v1918, 0
    %v1969 = vsel %vm67, %v1919, 0
    %1971 = vmatprep.subr.bf16.mxu0 0
    %1972 = vmatpush1.bf16.msra.mxu0 %v1951
    %1973 = vmatprep.subr.bf16.mxu0 0
    %1974 = vmatpush1.bf16.msra.mxu0 %v1952
    %1975 = vmatprep.subr.bf16.mxu0 0
    %1976 = vmatpush1.bf16.msra.mxu0 %v1953
    %1977 = vmatprep.subr.bf16.mxu0 0
    %1978 = vmatpush1.bf16.msra.mxu0 %v1954
    %1979 = vmatprep.subr.bf16.mxu0 0
    %1980 = vmatpush1.bf16.msra.mxu0 0
    %1981 = vmatprep.subr.bf16.mxu0 0
    %1982 = vmatpush1.bf16.msra.mxu0 0
    %1983 = vmatprep.subr.bf16.mxu0 0
    %1984 = vmatpush1.bf16.msra.mxu0 0
    %1985 = vmatprep.subr.bf16.mxu0 0
    %1986 = vmatpush1.bf16.msra.mxu0 0
    %1987 = vmatprep.subr.bf16.mxu0 0
    %1988 = vmatpush1.bf16.msra.mxu0 0
    %1989 = vmatprep.subr.bf16.mxu0 0
    %1990 = vmatpush1.bf16.msra.mxu0 0
    %1991 = vmatprep.subr.bf16.mxu0 0
    %1992 = vmatpush1.bf16.msra.mxu0 0
    %1993 = vmatprep.subr.bf16.mxu0 0
    %1994 = vmatpush1.bf16.msra.mxu0 0
    %1995 = vmatprep.subr.bf16.mxu0 0
    %1996 = vmatpush1.bf16.msra.mxu0 0
    %1997 = vmatprep.subr.bf16.mxu0 0
    %1998 = vmatpush1.bf16.msra.mxu0 0
    %1999 = vmatprep.subr.bf16.mxu0 0
    %2000 = vmatpush1.bf16.msra.mxu0 0
    %2001 = vmatprep.subr.bf16.mxu0 0
    %2002 = vmatpush1.bf16.msra.mxu0 0
    %2003 = vmatprep.mubr.bf16.mxu0 0
    %2004 = vmatmul.mubr.bf16.gmra.mrb[0].mxu0 %v1960
    %v2005 = vpop.f32.mrb[0].mxu0
    %v2006 = vadd.f32 %v1933, %v2005
    %v2007 = vpop.f32.mrb[0].mxu0
    %v2008 = vpop.f32.mrb[0].mxu0
    %v2009 = vadd.f32 %v1933, %v2008
    %v2010 = vpop.f32.mrb[0].mxu0
    %2011 = vmatprep.mubr.bf16.mxu0 0
    %2012 = vmatmul.mubr.bf16.gmra.mrb[0].mxu0 %v1963
    %v2013 = vpop.f32.mrb[0].mxu0
    %v2014 = vadd.f32 %v1933, %v2013
    %v2015 = vpop.f32.mrb[0].mxu0
    %v2016 = vpop.f32.mrb[0].mxu0
    %v2017 = vadd.f32 %v1933, %v2016
    %v2018 = vpop.f32.mrb[0].mxu0
    %2019 = vmatprep.mubr.bf16.mxu0 0
    %2020 = vmatmul.mubr.bf16.gmra.mrb[0].mxu0 %v1966
    %v2021 = vpop.f32.mrb[0].mxu0
    %v2022 = vadd.f32 %v1933, %v2021
    %v2023 = vpop.f32.mrb[0].mxu0
    %v2024 = vpop.f32.mrb[0].mxu0
    %v2025 = vadd.f32 %v1933, %v2024
    %v2026 = vpop.f32.mrb[0].mxu0
    %2027 = vmatprep.mubr.bf16.mxu0 0
    %2028 = vmatmul.mubr.bf16.gmra.mrb[0].mxu0 %v1969
    %v2029 = vpop.f32.mrb[0].mxu0
    %v2030 = vadd.f32 %v1933, %v2029
    %v2031 = vpop.f32.mrb[0].mxu0
    %v2032 = vpop.f32.mrb[0].mxu0
    %v2033 = vadd.f32 %v1933, %v2032
    %v2034 = vpop.f32.mrb[0].mxu0
    %2035 = vdwg.mxu0
    %v2036 = vadd.f32 %v57, %v2006
    %v2037 = vadd.f32 %v58, %v2009
    %v2038 = vadd.f32 %v59, %v2014
    %v2039 = vadd.f32 %v60, %v2017
    %v2040 = vadd.f32 %v61, %v2022
    %v2041 = vadd.f32 %v62, %v2025
    %v2042 = vadd.f32 %v63, %v2030
    %v2043 = vadd.f32 %v64, %v2033
    %v2044 = vld [vmem:[%s6] sm:$0x1]
    %v2045 = vld [vmem:[%s7] sm:$0x1]
    %v2046 = vsel %vm67, %v2036, 0.0
    %2047 = vadd.xlane.f32.xlu0 %v2046
    %v2048 = vpop.xlane.xlu0 %2047
    %v2049 = vsel %vm67, %v2037, 0.0
    %2050 = vadd.xlane.f32.xlu0 %v2049
    %v2051 = vpop.xlane.xlu0 %2050
    %v2052 = vsel %vm67, %v2038, 0.0
    %2053 = vadd.xlane.f32.xlu0 %v2052
    %v2054 = vpop.xlane.xlu0 %2053
    %v2055 = vsel %vm67, %v2039, 0.0
    %2056 = vadd.xlane.f32.xlu0 %v2055
    %v2057 = vpop.xlane.xlu0 %2056
    %v2058 = vsel %vm67, %v2040, 0.0
    %2059 = vadd.xlane.f32.xlu0 %v2058
    %v2060 = vpop.xlane.xlu0 %2059
    %v2061 = vsel %vm67, %v2041, 0.0
    %2062 = vadd.xlane.f32.xlu0 %v2061
    %v2063 = vpop.xlane.xlu0 %2062
    %v2064 = vsel %vm67, %v2042, 0.0
    %2065 = vadd.xlane.f32.xlu0 %v2064
    %v2066 = vpop.xlane.xlu0 %2065
    %v2067 = vsel %vm67, %v2043, 0.0
    %2068 = vadd.xlane.f32.xlu0 %v2067
    %v2069 = vpop.xlane.xlu0 %2068
    %v2070 = vmul.f32 %v2048, %v92
    %v2071 = vmul.f32 %v2051, %v92
    %v2072 = vmul.f32 %v2054, %v92
    %v2073 = vmul.f32 %v2057, %v92
    %v2074 = vmul.f32 %v2060, %v92
    %v2075 = vmul.f32 %v2063, %v92
    %v2076 = vmul.f32 %v2066, %v92
    %v2077 = vmul.f32 %v2069, %v92
    %v2078 = vsub.f32 %v2036, %v2070
    %v2079 = vsub.f32 %v2037, %v2071
    %v2080 = vsub.f32 %v2038, %v2072
    %v2081 = vsub.f32 %v2039, %v2073
    %v2082 = vsub.f32 %v2040, %v2074
    %v2083 = vsub.f32 %v2041, %v2075
    %v2084 = vsub.f32 %v2042, %v2076
    %v2085 = vsub.f32 %v2043, %v2077
    %v2086 = vmul.f32 %v2078, %v2078
    %v2087 = vmul.f32 %v2079, %v2079
    %v2088 = vmul.f32 %v2080, %v2080
    %v2089 = vmul.f32 %v2081, %v2081
    %v2090 = vmul.f32 %v2082, %v2082
    %v2091 = vmul.f32 %v2083, %v2083
    %v2092 = vmul.f32 %v2084, %v2084
    %v2093 = vmul.f32 %v2085, %v2085
    %v2094 = vsel %vm67, %v2086, 0.0
    %2095 = vadd.xlane.f32.xlu0 %v2094
    %v2096 = vpop.xlane.xlu0 %2095
    %v2097 = vsel %vm67, %v2087, 0.0
    %2098 = vadd.xlane.f32.xlu0 %v2097
    %v2099 = vpop.xlane.xlu0 %2098
    %v2100 = vsel %vm67, %v2088, 0.0
    %2101 = vadd.xlane.f32.xlu0 %v2100
    %v2102 = vpop.xlane.xlu0 %2101
    %v2103 = vsel %vm67, %v2089, 0.0
    %2104 = vadd.xlane.f32.xlu0 %v2103
    %v2105 = vpop.xlane.xlu0 %2104
    %v2106 = vsel %vm67, %v2090, 0.0
    %2107 = vadd.xlane.f32.xlu0 %v2106
    %v2108 = vpop.xlane.xlu0 %2107
    %v2109 = vsel %vm67, %v2091, 0.0
    %2110 = vadd.xlane.f32.xlu0 %v2109
    %v2111 = vpop.xlane.xlu0 %2110
    %v2112 = vsel %vm67, %v2092, 0.0
    %2113 = vadd.xlane.f32.xlu0 %v2112
    %v2114 = vpop.xlane.xlu0 %2113
    %v2115 = vsel %vm67, %v2093, 0.0
    %2116 = vadd.xlane.f32.xlu0 %v2115
    %v2117 = vpop.xlane.xlu0 %2116
    %v2118 = vmul.f32 %v2096, %v92
    %v2119 = vmul.f32 %v2099, %v92
    %v2120 = vmul.f32 %v2102, %v92
    %v2121 = vmul.f32 %v2105, %v92
    %v2122 = vmul.f32 %v2108, %v92
    %v2123 = vmul.f32 %v2111, %v92
    %v2124 = vmul.f32 %v2114, %v92
    %v2125 = vmul.f32 %v2117, %v92
    %v2126 = vadd.f32 %v2118, 1e-05
    %v2127 = vadd.f32 %v2119, 1e-05
    %v2128 = vadd.f32 %v2120, 1e-05
    %v2129 = vadd.f32 %v2121, 1e-05
    %v2130 = vadd.f32 %v2122, 1e-05
    %v2131 = vadd.f32 %v2123, 1e-05
    %v2132 = vadd.f32 %v2124, 1e-05
    %v2133 = vadd.f32 %v2125, 1e-05
    %v2134 = vrsqrt.pop %v2126
    %v2135 = vrsqrt.pop %v2127
    %v2136 = vrsqrt.pop %v2128
    %v2137 = vrsqrt.pop %v2129
    %v2138 = vrsqrt.pop %v2130
    %v2139 = vrsqrt.pop %v2131
    %v2140 = vrsqrt.pop %v2132
    %v2141 = vrsqrt.pop %v2133
    %v2142 = vmul.f32 %v2078, %v2134
    %v2143 = vmul.f32 %v2079, %v2135
    %v2144 = vmul.f32 %v2080, %v2136
    %v2145 = vmul.f32 %v2081, %v2137
    %v2146 = vmul.f32 %v2082, %v2138
    %v2147 = vmul.f32 %v2083, %v2139
    %v2148 = vmul.f32 %v2084, %v2140
    %v2149 = vmul.f32 %v2085, %v2141
    %v2151 = vlaneseq
    %v2152 = vshrl.u32 %v2151, 7
    %v2153 = vsub.s32 0, %v2152
    %v2154 = vrot.slane %v2044, %v2153
    %v2156 = vmul.f32 %v2142, %v2154
    %v2157 = vmul.f32 %v2143, %v2154
    %v2158 = vmul.f32 %v2144, %v2154
    %v2159 = vmul.f32 %v2145, %v2154
    %v2160 = vmul.f32 %v2146, %v2154
    %v2161 = vmul.f32 %v2147, %v2154
    %v2162 = vmul.f32 %v2148, %v2154
    %v2163 = vmul.f32 %v2149, %v2154
    %v2165 = vlaneseq
    %v2166 = vshrl.u32 %v2165, 7
    %v2167 = vsub.s32 0, %v2166
    %v2168 = vrot.slane %v2045, %v2167
    %v2170 = vadd.f32 %v2156, %v2168
    %v2171 = vadd.f32 %v2157, %v2168
    %v2172 = vadd.f32 %v2158, %v2168
    %v2173 = vadd.f32 %v2159, %v2168
    %v2174 = vadd.f32 %v2160, %v2168
    %v2175 = vadd.f32 %v2161, %v2168
    %v2176 = vadd.f32 %v2162, %v2168
    %v2177 = vadd.f32 %v2163, %v2168
    %v2178 = vpack.c.bf16 %v2171, %v2170
    %v2179 = vpack.c.bf16 %v2173, %v2172
    %v2180 = vpack.c.bf16 %v2175, %v2174
    %v2181 = vpack.c.bf16 %v2177, %v2176
    %v2182 = vld [vmem:[%s8] sm:$0xff]
    %v2183 = vld [vmem:[%s8 + $0x8] sm:$0xff]
    %v2184 = vld [vmem:[%s8 + $0x10] sm:$0xff]
    %v2185 = vld [vmem:[%s8 + $0x18] sm:$0xff]
    %v2186 = vld [vmem:[%s8 + $0x20] sm:$0xff]
    %v2187 = vld [vmem:[%s8 + $0x28] sm:$0xff]
    %v2188 = vld [vmem:[%s8 + $0x30] sm:$0xff]
    %v2189 = vld [vmem:[%s8 + $0x38] sm:$0xff]
    %v2190 = vld [vmem:[%s9] sm:$0x3]
    %v2192 = vlaneseq
    %v2193 = vshrl.u32 %v2192, 7
    %v2194 = vsub.s32 0, %v2193
    %v2195 = vrot.slane %v2190, %v2194
    %v2196 = vlaneseq
    %v2197 = vshrl.u32 %v2196, 7
    %v2198 = vsub.s32 1, %v2197
    %v2199 = vrot.slane %v2190, %v2198
    %v2210 = vunpack.c.l.b16 %v2182
    %v2211 = vunpack.c.h.b16 %v2182
    %v2212 = vunpack.c.l.b16 %v2183
    %v2213 = vunpack.c.h.b16 %v2183
    %v2214 = vunpack.c.l.b16 %v2184
    %v2215 = vunpack.c.h.b16 %v2184
    %v2216 = vunpack.c.l.b16 %v2185
    %v2217 = vunpack.c.h.b16 %v2185
    %v2218 = vunpack.c.l.b16 %v2186
    %v2219 = vunpack.c.h.b16 %v2186
    %v2220 = vunpack.c.l.b16 %v2187
    %v2221 = vunpack.c.h.b16 %v2187
    %v2222 = vunpack.c.l.b16 %v2188
    %v2223 = vunpack.c.h.b16 %v2188
    %v2224 = vunpack.c.l.b16 %v2189
    %v2225 = vunpack.c.h.b16 %v2189
    %v2226 = vpack.c.b16 %v2212, %v2210
    %v2227 = vpack.c.b16 %v2213, %v2211
    %v2228 = vpack.c.b16 %v2216, %v2214
    %v2229 = vpack.c.b16 %v2217, %v2215
    %v2230 = vpack.c.b16 %v2220, %v2218
    %v2231 = vpack.c.b16 %v2221, %v2219
    %v2232 = vpack.c.b16 %v2224, %v2222
    %v2233 = vpack.c.b16 %v2225, %v2223
    %v2243 = vsel %vm67, %v2178, 0
    %v2246 = vsel %vm67, %v2179, 0
    %v2249 = vsel %vm67, %v2180, 0
    %v2252 = vsel %vm67, %v2181, 0
    %2254 = vmatprep.subr.bf16.mxu0 %v2227
    %2255 = vmatpush1.bf16.msra.mxu0 %v2226
    %2256 = vmatprep.subr.bf16.mxu0 %v2229
    %2257 = vmatpush1.bf16.msra.mxu0 %v2228
    %2258 = vmatprep.subr.bf16.mxu0 %v2231
    %2259 = vmatpush1.bf16.msra.mxu0 %v2230
    %2260 = vmatprep.subr.bf16.mxu0 %v2233
    %2261 = vmatpush1.bf16.msra.mxu0 %v2232
    %2262 = vmatprep.subr.bf16.mxu0 0
    %2263 = vmatpush1.bf16.msra.mxu0 0
    %2264 = vmatprep.subr.bf16.mxu0 0
    %2265 = vmatpush1.bf16.msra.mxu0 0
    %2266 = vmatprep.subr.bf16.mxu0 0
    %2267 = vmatpush1.bf16.msra.mxu0 0
    %2268 = vmatprep.subr.bf16.mxu0 0
    %2269 = vmatpush1.bf16.msra.mxu0 0
    %2270 = vmatprep.subr.bf16.mxu0 0
    %2271 = vmatpush1.bf16.msra.mxu0 0
    %2272 = vmatprep.subr.bf16.mxu0 0
    %2273 = vmatpush1.bf16.msra.mxu0 0
    %2274 = vmatprep.subr.bf16.mxu0 0
    %2275 = vmatpush1.bf16.msra.mxu0 0
    %2276 = vmatprep.subr.bf16.mxu0 0
    %2277 = vmatpush1.bf16.msra.mxu0 0
    %2278 = vmatprep.subr.bf16.mxu0 0
    %2279 = vmatpush1.bf16.msra.mxu0 0
    %2280 = vmatprep.subr.bf16.mxu0 0
    %2281 = vmatpush1.bf16.msra.mxu0 0
    %2282 = vmatprep.subr.bf16.mxu0 0
    %2283 = vmatpush1.bf16.msra.mxu0 0
    %2284 = vmatprep.subr.bf16.mxu0 0
    %2285 = vmatpush1.bf16.msra.mxu0 0
    %2286 = vmatprep.mubr.bf16.mxu0 0
    %2287 = vmatmul.mubr.bf16.gmra.mrb[0].mxu0 %v2243
    %v2288 = vpop.f32.mrb[0].mxu0
    %v2289 = vadd.f32 %v2195, %v2288
    %v2290 = vpop.f32.mrb[0].mxu0
    %v2291 = vadd.f32 %v2199, %v2290
    %v2292 = vpop.f32.mrb[0].mxu0
    %v2293 = vadd.f32 %v2195, %v2292
    %v2294 = vpop.f32.mrb[0].mxu0
    %v2295 = vadd.f32 %v2199, %v2294
    %2296 = vmatprep.mubr.bf16.mxu0 0
    %2297 = vmatmul.mubr.bf16.gmra.mrb[0].mxu0 %v2246
    %v2298 = vpop.f32.mrb[0].mxu0
    %v2299 = vadd.f32 %v2195, %v2298
    %v2300 = vpop.f32.mrb[0].mxu0
    %v2301 = vadd.f32 %v2199, %v2300
    %v2302 = vpop.f32.mrb[0].mxu0
    %v2303 = vadd.f32 %v2195, %v2302
    %v2304 = vpop.f32.mrb[0].mxu0
    %v2305 = vadd.f32 %v2199, %v2304
    %2306 = vmatprep.mubr.bf16.mxu0 0
    %2307 = vmatmul.mubr.bf16.gmra.mrb[0].mxu0 %v2249
    %v2308 = vpop.f32.mrb[0].mxu0
    %v2309 = vadd.f32 %v2195, %v2308
    %v2310 = vpop.f32.mrb[0].mxu0
    %v2311 = vadd.f32 %v2199, %v2310
    %v2312 = vpop.f32.mrb[0].mxu0
    %v2313 = vadd.f32 %v2195, %v2312
    %v2314 = vpop.f32.mrb[0].mxu0
    %v2315 = vadd.f32 %v2199, %v2314
    %2316 = vmatprep.mubr.bf16.mxu0 0
    %2317 = vmatmul.mubr.bf16.gmra.mrb[0].mxu0 %v2252
    %v2318 = vpop.f32.mrb[0].mxu0
    %v2319 = vadd.f32 %v2195, %v2318
    %v2320 = vpop.f32.mrb[0].mxu0
    %v2321 = vadd.f32 %v2199, %v2320
    %v2322 = vpop.f32.mrb[0].mxu0
    %v2323 = vadd.f32 %v2195, %v2322
    %v2324 = vpop.f32.mrb[0].mxu0
    %v2325 = vadd.f32 %v2199, %v2324
    %2326 = vdwg.mxu0
    %v2327 = vmax.f32 %v2289, 0.0
    %v2328 = vmax.f32 %v2291, 0.0
    %v2329 = vmax.f32 %v2293, 0.0
    %v2330 = vmax.f32 %v2295, 0.0
    %v2331 = vmax.f32 %v2299, 0.0
    %v2332 = vmax.f32 %v2301, 0.0
    %v2333 = vmax.f32 %v2303, 0.0
    %v2334 = vmax.f32 %v2305, 0.0
    %v2335 = vmax.f32 %v2309, 0.0
    %v2336 = vmax.f32 %v2311, 0.0
    %v2337 = vmax.f32 %v2313, 0.0
    %v2338 = vmax.f32 %v2315, 0.0
    %v2339 = vmax.f32 %v2319, 0.0
    %v2340 = vmax.f32 %v2321, 0.0
    %v2341 = vmax.f32 %v2323, 0.0
    %v2342 = vmax.f32 %v2325, 0.0
    %v2343 = vpack.c.bf16 %v2329, %v2327
    %v2344 = vpack.c.bf16 %v2330, %v2328
    %v2345 = vpack.c.bf16 %v2333, %v2331
    %v2346 = vpack.c.bf16 %v2334, %v2332
    %v2347 = vpack.c.bf16 %v2337, %v2335
    %v2348 = vpack.c.bf16 %v2338, %v2336
    %v2349 = vpack.c.bf16 %v2341, %v2339
    %v2350 = vpack.c.bf16 %v2342, %v2340
    %v2351 = vld [vmem:[%s10] sm:$0xf]
    %v2352 = vld [vmem:[%s10 + $0x4] sm:$0xf]
    %v2353 = vld [vmem:[%s10 + $0x8] sm:$0xf]
    %v2354 = vld [vmem:[%s10 + $0xc] sm:$0xf]
    %v2355 = vld [vmem:[%s10 + $0x10] sm:$0xf]
    %v2356 = vld [vmem:[%s10 + $0x14] sm:$0xf]
    %v2357 = vld [vmem:[%s10 + $0x18] sm:$0xf]
    %v2358 = vld [vmem:[%s10 + $0x1c] sm:$0xf]
    %v2359 = vld [vmem:[%s10 + $0x20] sm:$0xf]
    %v2360 = vld [vmem:[%s10 + $0x24] sm:$0xf]
    %v2361 = vld [vmem:[%s10 + $0x28] sm:$0xf]
    %v2362 = vld [vmem:[%s10 + $0x2c] sm:$0xf]
    %v2363 = vld [vmem:[%s10 + $0x30] sm:$0xf]
    %v2364 = vld [vmem:[%s10 + $0x34] sm:$0xf]
    %v2365 = vld [vmem:[%s10 + $0x38] sm:$0xf]
    %v2366 = vld [vmem:[%s10 + $0x3c] sm:$0xf]
    %v2367 = vld [vmem:[%s10 + $0x40] sm:$0xf]
    %v2368 = vld [vmem:[%s10 + $0x44] sm:$0xf]
    %v2369 = vld [vmem:[%s10 + $0x48] sm:$0xf]
    %v2370 = vld [vmem:[%s10 + $0x4c] sm:$0xf]
    %v2371 = vld [vmem:[%s10 + $0x50] sm:$0xf]
    %v2372 = vld [vmem:[%s10 + $0x54] sm:$0xf]
    %v2373 = vld [vmem:[%s10 + $0x58] sm:$0xf]
    %v2374 = vld [vmem:[%s10 + $0x5c] sm:$0xf]
    %v2375 = vld [vmem:[%s10 + $0x60] sm:$0xf]
    %v2376 = vld [vmem:[%s10 + $0x64] sm:$0xf]
    %v2377 = vld [vmem:[%s10 + $0x68] sm:$0xf]
    %v2378 = vld [vmem:[%s10 + $0x6c] sm:$0xf]
    %v2379 = vld [vmem:[%s10 + $0x70] sm:$0xf]
    %v2380 = vld [vmem:[%s10 + $0x74] sm:$0xf]
    %v2381 = vld [vmem:[%s10 + $0x78] sm:$0xf]
    %v2382 = vld [vmem:[%s10 + $0x7c] sm:$0xf]
    %v2383 = vld [vmem:[%s11] sm:$0x1]
    %v2385 = vlaneseq
    %v2386 = vshrl.u32 %v2385, 7
    %v2387 = vsub.s32 0, %v2386
    %v2388 = vrot.slane %v2383, %v2387
    %v2422 = vunpack.c.l.b16 %v2351
    %v2423 = vunpack.c.l.b16 %v2352
    %v2424 = vunpack.c.l.b16 %v2353
    %v2425 = vunpack.c.l.b16 %v2354
    %v2426 = vunpack.c.l.b16 %v2355
    %v2427 = vunpack.c.l.b16 %v2356
    %v2428 = vunpack.c.l.b16 %v2357
    %v2429 = vunpack.c.l.b16 %v2358
    %v2430 = vunpack.c.l.b16 %v2359
    %v2431 = vunpack.c.l.b16 %v2360
    %v2432 = vunpack.c.l.b16 %v2361
    %v2433 = vunpack.c.l.b16 %v2362
    %v2434 = vunpack.c.l.b16 %v2363
    %v2435 = vunpack.c.l.b16 %v2364
    %v2436 = vunpack.c.l.b16 %v2365
    %v2437 = vunpack.c.l.b16 %v2366
    %v2438 = vunpack.c.l.b16 %v2367
    %v2439 = vunpack.c.l.b16 %v2368
    %v2440 = vunpack.c.l.b16 %v2369
    %v2441 = vunpack.c.l.b16 %v2370
    %v2442 = vunpack.c.l.b16 %v2371
    %v2443 = vunpack.c.l.b16 %v2372
    %v2444 = vunpack.c.l.b16 %v2373
    %v2445 = vunpack.c.l.b16 %v2374
    %v2446 = vunpack.c.l.b16 %v2375
    %v2447 = vunpack.c.l.b16 %v2376
    %v2448 = vunpack.c.l.b16 %v2377
    %v2449 = vunpack.c.l.b16 %v2378
    %v2450 = vunpack.c.l.b16 %v2379
    %v2451 = vunpack.c.l.b16 %v2380
    %v2452 = vunpack.c.l.b16 %v2381
    %v2453 = vunpack.c.l.b16 %v2382
    %v2454 = vpack.c.b16 %v2423, %v2422
    %v2455 = vpack.c.b16 %v2425, %v2424
    %v2456 = vpack.c.b16 %v2427, %v2426
    %v2457 = vpack.c.b16 %v2429, %v2428
    %v2458 = vpack.c.b16 %v2431, %v2430
    %v2459 = vpack.c.b16 %v2433, %v2432
    %v2460 = vpack.c.b16 %v2435, %v2434
    %v2461 = vpack.c.b16 %v2437, %v2436
    %v2462 = vpack.c.b16 %v2439, %v2438
    %v2463 = vpack.c.b16 %v2441, %v2440
    %v2464 = vpack.c.b16 %v2443, %v2442
    %v2465 = vpack.c.b16 %v2445, %v2444
    %v2466 = vpack.c.b16 %v2447, %v2446
    %v2467 = vpack.c.b16 %v2449, %v2448
    %v2468 = vpack.c.b16 %v2451, %v2450
    %v2469 = vpack.c.b16 %v2453, %v2452
    %2486 = vmatprep.subr.bf16.mxu0 0
    %2487 = vmatpush1.bf16.msra.mxu0 %v2454
    %2488 = vmatprep.subr.bf16.mxu0 0
    %2489 = vmatpush1.bf16.msra.mxu0 %v2455
    %2490 = vmatprep.subr.bf16.mxu0 0
    %2491 = vmatpush1.bf16.msra.mxu0 %v2456
    %2492 = vmatprep.subr.bf16.mxu0 0
    %2493 = vmatpush1.bf16.msra.mxu0 %v2457
    %2494 = vmatprep.subr.bf16.mxu0 0
    %2495 = vmatpush1.bf16.msra.mxu0 %v2458
    %2496 = vmatprep.subr.bf16.mxu0 0
    %2497 = vmatpush1.bf16.msra.mxu0 %v2459
    %2498 = vmatprep.subr.bf16.mxu0 0
    %2499 = vmatpush1.bf16.msra.mxu0 %v2460
    %2500 = vmatprep.subr.bf16.mxu0 0
    %2501 = vmatpush1.bf16.msra.mxu0 %v2461
    %2502 = vmatprep.subr.bf16.mxu0 0
    %2503 = vmatpush1.bf16.msra.mxu0 %v2462
    %2504 = vmatprep.subr.bf16.mxu0 0
    %2505 = vmatpush1.bf16.msra.mxu0 %v2463
    %2506 = vmatprep.subr.bf16.mxu0 0
    %2507 = vmatpush1.bf16.msra.mxu0 %v2464
    %2508 = vmatprep.subr.bf16.mxu0 0
    %2509 = vmatpush1.bf16.msra.mxu0 %v2465
    %2510 = vmatprep.subr.bf16.mxu0 0
    %2511 = vmatpush1.bf16.msra.mxu0 %v2466
    %2512 = vmatprep.subr.bf16.mxu0 0
    %2513 = vmatpush1.bf16.msra.mxu0 %v2467
    %2514 = vmatprep.subr.bf16.mxu0 0
    %2515 = vmatpush1.bf16.msra.mxu0 %v2468
    %2516 = vmatprep.subr.bf16.mxu0 0
    %2517 = vmatpush1.bf16.msra.mxu0 %v2469
    %2518 = vmatprep.mubr.bf16.mxu0 %v2344
    %2519 = vmatmul.mubr.bf16.gmra.mrb[0].mxu0 %v2343
    %v2520 = vpop.f32.mrb[0].mxu0
    %v2521 = vadd.f32 %v2388, %v2520
    %v2522 = vpop.f32.mrb[0].mxu0
    %v2523 = vpop.f32.mrb[0].mxu0
    %v2524 = vadd.f32 %v2388, %v2523
    %v2525 = vpop.f32.mrb[0].mxu0
    %2526 = vmatprep.mubr.bf16.mxu0 %v2346
    %2527 = vmatmul.mubr.bf16.gmra.mrb[0].mxu0 %v2345
    %v2528 = vpop.f32.mrb[0].mxu0
    %v2529 = vadd.f32 %v2388, %v2528
    %v2530 = vpop.f32.mrb[0].mxu0
    %v2531 = vpop.f32.mrb[0].mxu0
    %v2532 = vadd.f32 %v2388, %v2531
    %v2533 = vpop.f32.mrb[0].mxu0
    %2534 = vmatprep.mubr.bf16.mxu0 %v2348
    %2535 = vmatmul.mubr.bf16.gmra.mrb[0].mxu0 %v2347
    %v2536 = vpop.f32.mrb[0].mxu0
    %v2537 = vadd.f32 %v2388, %v2536
    %v2538 = vpop.f32.mrb[0].mxu0
    %v2539 = vpop.f32.mrb[0].mxu0
    %v2540 = vadd.f32 %v2388, %v2539
    %v2541 = vpop.f32.mrb[0].mxu0
    %2542 = vmatprep.mubr.bf16.mxu0 %v2350
    %2543 = vmatmul.mubr.bf16.gmra.mrb[0].mxu0 %v2349
    %v2544 = vpop.f32.mrb[0].mxu0
    %v2545 = vadd.f32 %v2388, %v2544
    %v2546 = vpop.f32.mrb[0].mxu0
    %v2547 = vpop.f32.mrb[0].mxu0
    %v2548 = vadd.f32 %v2388, %v2547
    %v2549 = vpop.f32.mrb[0].mxu0
    %2550 = vdwg.mxu0
    %v2551 = vadd.f32 %v2036, %v2521
    %v2552 = vadd.f32 %v2037, %v2524
    %v2553 = vadd.f32 %v2038, %v2529
    %v2554 = vadd.f32 %v2039, %v2532
    %v2555 = vadd.f32 %v2040, %v2537
    %v2556 = vadd.f32 %v2041, %v2540
    %v2557 = vadd.f32 %v2042, %v2545
    %v2558 = vadd.f32 %v2043, %v2548
    %2559 = vst.msk [vmem:[#allocation5] sm:$0xff] %vm67, %v2551
    %2560 = vst.msk [vmem:[#allocation5 + $0x8] sm:$0xff] %vm67, %v2552
    %2561 = vst.msk [vmem:[#allocation5 + $0x10] sm:$0xff] %vm67, %v2553
    %2562 = vst.msk [vmem:[#allocation5 + $0x18] sm:$0xff] %vm67, %v2554
    %2563 = vst.msk [vmem:[#allocation5 + $0x20] sm:$0xff] %vm67, %v2555
    %2564 = vst.msk [vmem:[#allocation5 + $0x28] sm:$0xff] %vm67, %v2556
    %2565 = vst.msk [vmem:[#allocation5 + $0x30] sm:$0xff] %vm67, %v2557
    %2566 = vst.msk [vmem:[#allocation5 + $0x38] sm:$0xff] %vm67, %v2558
    // Predicated region
    $region54: #{tpu_custom_call.1} parent=1 // pred_check
      _
    $region55: #{tpu_custom_call.1} parent=1 // pred_check_branch
      %2568 = sbr.rel (0) target = $region57
    $region56: #{tpu_custom_call.1} parent=1 // pred_region
      %s2570 = ssub.s32 1024, 1024
      %2571 = vsyncadd [#allocation4], %s2570
      %s2572 = sshll.u32 [#allocation5], 4
      %s2573 = int_to_ptr.vmem [resolvable:$true] %s2572
      %2578 = dma.vmem_to_hbm [thread:$0]  %s2573, 1024, %s12, [#allocation4], 128, 128, 8
    $region57: #{tpu_custom_call.1} parent=1 // pred_fallthru
      _
    // Predicated region
    $region58: #{tpu_custom_call.1} parent=1 // pred_check
      _
    $region59: #{tpu_custom_call.1} parent=1 // pred_check_branch
      %2580 = sbr.rel (0) target = $region61
    $region60: #{tpu_custom_call.1} parent=1 // pred_region
      %2581 = dma.done [#allocation4], 1024
    $region61: #{tpu_custom_call.1} parent=1 // pred_fallthru
      _
    %2582 = vsyncpa [#allocation3], 1
    %2583 = vsyncpa [#allocation4], 1

</llo_original>
